<compile_context>
chip_gen: v7x
topology: tpu7x:2x2x1
jax: 0.10.0
libtpu: 0.0.40
codegen_flags: <defaults>
</compile_context>

<pallas_src>
import numpy as np

import jax
import jax.numpy as jnp
from jax import lax
from jax.experimental import pallas as pl
from jax.experimental.pallas import tpu as pltpu


# ----------------------------------------------------------------------------
# Host-side weight algebra: express every stage as a dense affine map acting on
# the activation flattened as (channel*H, W), then compose them all.
# ----------------------------------------------------------------------------
def _conv_h3s2_as_matmul(w, b, H):
    """Conv2d(kernel=(3,1), stride=(2,1), padding=(1,0)) as a dense matrix.

    w: (Co, Ci, 3, 1), b: (Co,).  Returns (Wm, bm, Ho) with
      Wm: (Co*Ho, Ci*H), bm: (Co*Ho, 1) acting on x flattened as (Ci*H, W).
    """
    Co, Ci = int(w.shape[0]), int(w.shape[1])
    Ho = (H + 2 - 3) // 2 + 1
    sel = np.zeros((Ho, 3, H), dtype=np.float32)      # sel[ho,k,h]=1 iff h==2*ho+k-1
    for ho in range(Ho):
        for k in range(3):
            h = 2 * ho + k - 1
            if 0 <= h < H:
                sel[ho, k, h] = 1.0
    w3 = w.reshape(Co, Ci, 3).astype(jnp.float32)
    Wm = jnp.einsum("oik,pkh->opih", w3, jnp.asarray(sel)).reshape(Co * Ho, Ci * H)
    bm = jnp.repeat(b.astype(jnp.float32), Ho).reshape(Co * Ho, 1)
    return Wm, bm, Ho


def _compose_1x1(wp, bp, Wf, bf, Ho):
    """Compose a 1x1 conv (wp, bp) with the affine map (Wf, bf) producing fds
    flattened as (Cin*Ho, W).  Returns (Cout*Ho, K) weight and (Cout*Ho, 1) bias."""
    Cout, Cin = int(wp.shape[0]), int(wp.shape[1])
    K = Wf.shape[1]
    w2 = wp.reshape(Cout, Cin).astype(jnp.float32)
    Wm = jnp.einsum("oc,chk->ohk", w2, Wf.reshape(Cin, Ho, K)).reshape(Cout * Ho, K)
    bm = jnp.einsum("oc,chk->ohk", w2, bf.reshape(Cin, Ho, 1)).reshape(Cout * Ho, 1)
    bm = bm + jnp.repeat(bp.astype(jnp.float32), Ho).reshape(Cout * Ho, 1)
    return Wm, bm


def _pad_channel_blocks(Wm, bm, Cout, Ho, Hop):
    """Zero-pad each per-channel Ho-row block to Hop rows (8-sublane alignment)."""
    K = Wm.shape[1]
    Wp = jnp.pad(Wm.reshape(Cout, Ho, K), ((0, 0), (0, Hop - Ho), (0, 0)))
    bp = jnp.pad(bm.reshape(Cout, Ho, 1), ((0, 0), (0, Hop - Ho), (0, 0)))
    return Wp.reshape(Cout * Hop, K), bp.reshape(Cout * Hop, 1)


# ----------------------------------------------------------------------------
# Fused kernel: per batch n, one projection matmul + per-channel attention,
# everything stays in VMEM / vregs.
# ----------------------------------------------------------------------------
def _make_fused_kernel(Cout, Hop):
    CHp = Cout * Hop

    def kernel(x_ref, w_ref, b_ref, o_ref):
        # Composed conv1 o conv2 o {Q,K,V}: ONE matmul.  qkv: (3*Cout*Hop, W)
        qkv = jnp.dot(w_ref[...], x_ref[0],
                      preferred_element_type=jnp.float32) + b_ref[...]

        # One XLU transpose covering every Q channel.
        qt_all = qkv[:CHp, :].T                                   # (W, Cout*Hop)

        outs = []
        for c in range(Cout):                                     # Cout small -> unrolled
            qt = qt_all[:, c * Hop:(c + 1) * Hop]                 # (W, Hop)  8-lane aligned
            k = qkv[CHp + c * Hop: CHp + (c + 1) * Hop, :]        # (Hop, W)  8-row aligned
            v = qkv[2 * CHp + c * Hop: 2 * CHp + (c + 1) * Hop, :]

            s = jnp.dot(qt, k, preferred_element_type=jnp.float32)    # (W, W)
            s = s - jnp.max(s, axis=-1, keepdims=True)
            e = jnp.exp(s)
            p = e * pl.reciprocal(jnp.sum(e, axis=-1, keepdims=True), approx=True)
            outs.append(jnp.dot(v, p, preferred_element_type=jnp.float32))  # (Hop, W)

        # Single stacked store of the whole (Cout*Hop, W) slab.
        o_ref[0] = jnp.concatenate(outs, axis=0).astype(o_ref.dtype)

    return kernel


# ----------------------------------------------------------------------------
# Full AttentionModule forward: host weight composition + one pallas_call.
# ----------------------------------------------------------------------------
def attention_module_forward(x, p):
    N, Cin, H, W = x.shape
    Cout = int(p["wq"].shape[0])
    two_convs = (H != 10)       # mirrors PyTorch `if x.shape[2] == 10` (static under jit)

    # Compose conv1 (and conv2) into one affine map Wf, bf: x_flat -> fds_flat.
    Wf, bf, Ho = _conv_h3s2_as_matmul(p["w1"], p["b1"], H)
    if two_convs:
        W2, b2, Ho = _conv_h3s2_as_matmul(p["w2"], p["b2"], Ho)
        Wf, bf = W2 @ Wf, W2 @ bf + b2

    Hop = ((Ho + 7) // 8) * 8          # sublane-aligned per-channel block height

    # Compose the three 1x1 projections on top, pad channel blocks, stack Q/K/V.
    blocks = []
    for wk, bk in (("wq", "bq"), ("wk", "bk"), ("wv", "bv")):
        Wm, bm = _compose_1x1(p[wk], p[bk], Wf, bf, Ho)
        blocks.append(_pad_channel_blocks(Wm, bm, Cout, Ho, Hop))
    W_all = jnp.concatenate([wb for wb, _ in blocks], axis=0)     # (3*Cout*Hop, Cin*H)
    b_all = jnp.concatenate([bb for _, bb in blocks], axis=0)     # (3*Cout*Hop, 1)

    x2d = x.reshape(N, Cin * H, W)     # contiguous reshape -> free

    out = pl.pallas_call(
        _make_fused_kernel(Cout, Hop),
        out_shape=jax.ShapeDtypeStruct((N, Cout * Hop, W), x.dtype),
        grid=(N,),
        in_specs=[
            pl.BlockSpec((1, Cin * H, W), lambda n: (n, 0, 0)),
            pl.BlockSpec(W_all.shape, lambda n: (0, 0)),
            pl.BlockSpec(b_all.shape, lambda n: (0, 0)),
        ],
        out_specs=pl.BlockSpec((1, Cout * Hop, W), lambda n: (n, 0, 0)),
        compiler_params=pltpu.CompilerParams(dimension_semantics=("parallel",)),
    )(x2d, W_all, b_all)

    # Drop zero-padded rows: (N, Cout*Hop, W) -> (N, Cout, Ho, W).
    return out.reshape(N, Cout, Hop, W)[:, :, :Ho, :]


# ----------------------------------------------------------------------------
# Pure-JAX reference (correctness check only)
# ----------------------------------------------------------------------------
def reference_forward(x, p):
    def conv(x, w, b):
        y = lax.conv_general_dilated(
            x, w, window_strides=(2, 1), padding=((1, 1), (0, 0)),
            dimension_numbers=("NCHW", "OIHW", "NCHW"))
        return y + b[None, :, None, None]

    def c1x1(x, w, b):
        return jnp.einsum("oc,nchw->nohw",
                          w.reshape(w.shape[0], w.shape[1]), x) \
            + b[None, :, None, None]

    fds = conv(x, p["w1"], p["b1"])
    if x.shape[2] != 10:
        fds = conv(fds, p["w2"], p["b2"])
    Q = c1x1(fds, p["wq"], p["bq"])
    K = c1x1(fds, p["wk"], p["bk"])
    V = c1x1(fds, p["wv"], p["bv"])
    A = jnp.einsum("nchw,nchv->ncwv", Q, K)      # matmul(Q.transpose(2,3), K)
    A = jax.nn.softmax(A, axis=-1)
    fo = jnp.einsum("nchw,ncwv->nchv", V, A)     # matmul(V, A)
    return fo


if __name__ == "__main__":
    N, Cin, Cout, H, W = 2, 4, 8, 16, 16
    key = jax.random.PRNGKey(0)
    ks = jax.random.split(key, 11)

    params = {
        "w1": 0.2 * jax.random.normal(ks[0], (Cin, Cin, 3, 1), jnp.float32),
        "b1": 0.1 * jax.random.normal(ks[1], (Cin,), jnp.float32),
        "w2": 0.2 * jax.random.normal(ks[2], (Cin, Cin, 3, 1), jnp.float32),
        "b2": 0.1 * jax.random.normal(ks[3], (Cin,), jnp.float32),
        "wq": 0.2 * jax.random.normal(ks[4], (Cout, Cin, 1, 1), jnp.float32),
        "bq": 0.1 * jax.random.normal(ks[5], (Cout,), jnp.float32),
        "wk": 0.2 * jax.random.normal(ks[6], (Cout, Cin, 1, 1), jnp.float32),
        "bk": 0.1 * jax.random.normal(ks[7], (Cout,), jnp.float32),
        "wv": 0.2 * jax.random.normal(ks[8], (Cout, Cin, 1, 1), jnp.float32),
        "bv": 0.1 * jax.random.normal(ks[9], (Cout,), jnp.float32),
    }
    x = jax.random.normal(ks[10], (N, Cin, H, W), jnp.float32)

    out = jax.jit(attention_module_forward)(x, params)
    out = jax.block_until_ready(out)

    ref = reference_forward(x, params)
    assert out.shape == ref.shape, (out.shape, ref.shape)
    # Tolerance accounts for the approximate (EUP) softmax reciprocal.
    if not jnp.allclose(out, ref, atol=2e-3, rtol=2e-3):
        raise AssertionError(
            f"Pallas output mismatch, max abs err {jnp.max(jnp.abs(out - ref))}")

    print("KERNEL_OK")
</pallas_src>

<mosaic_0001>
module attributes {stable_mosaic.version = 11 : i64} {
  func.func @kernel(%arg0: i32, %arg1: memref<1x64x16xf32, #tpu.memory_space<vmem>>, %arg2: memref<192x64xf32, #tpu.memory_space<vmem>>, %arg3: memref<192x1xf32, #tpu.memory_space<vmem>>, %arg4: memref<1x64x16xf32, #tpu.memory_space<vmem>>) attributes {dimension_semantics = [#tpu.dimension_semantics<parallel>], iteration_bounds = array<i64: 2>, scalar_prefetch = 0 : i64, scratch_operands = 0 : i64, tpu.core_type = #tpu.core_type<tc>, window_params = [{transform_indices = @transform_0, window_bounds = array<i64: 1, 64, 16>}, {pipeline_mode = #tpu.pipeline_mode<synchronous>, transform_indices = @transform_1, window_bounds = array<i64: 192, 64>}, {pipeline_mode = #tpu.pipeline_mode<synchronous>, transform_indices = @transform_2, window_bounds = array<i64: 192, 1>}, {transform_indices = @transform_3, window_bounds = array<i64: 1, 64, 16>}]} {
    %c0 = arith.constant 0 : index
    %c0_0 = arith.constant 0 : index
    %0 = vector.load %arg2[%c0, %c0_0] : memref<192x64xf32, #tpu.memory_space<vmem>>, vector<192x64xf32>
    %c0_1 = arith.constant 0 : index
    %c0_2 = arith.constant 0 : index
    %c0_3 = arith.constant 0 : index
    %1 = vector.load %arg1[%c0_1, %c0_2, %c0_3] : memref<1x64x16xf32, #tpu.memory_space<vmem>>, vector<1x64x16xf32>
    %2 = vector.shape_cast %1 : vector<1x64x16xf32> to vector<64x16xf32>
    %cst = arith.constant dense<0.000000e+00> : vector<192x16xf32>
    %3 = tpu.matmul %0, %2, %cst {dimension_numbers = #tpu.dot_dimension_numbers<[1], [0], [0], [1], [0, 0, 1, 1], [], []>} : vector<192x64xf32>, vector<64x16xf32>, vector<192x16xf32> -> vector<192x16xf32>
    %c0_4 = arith.constant 0 : index
    %c0_5 = arith.constant 0 : index
    %4 = vector.load %arg3[%c0_4, %c0_5] : memref<192x1xf32, #tpu.memory_space<vmem>>, vector<192x1xf32>
    %5 = vector.broadcast %4 : vector<192x1xf32> to vector<192x16xf32>
    %6 = arith.addf %3, %5 : vector<192x16xf32>
    %7 = vector.extract_strided_slice %6 {offsets = [0, 0], sizes = [64, 16], strides = [1, 1]} : vector<192x16xf32> to vector<64x16xf32>
    %8 = tpu.transpose %7, [1, 0] : vector<64x16xf32> -> vector<16x64xf32>
    %9 = vector.extract_strided_slice %8 {offsets = [0, 0], sizes = [16, 8], strides = [1, 1]} : vector<16x64xf32> to vector<16x8xf32>
    %10 = vector.extract_strided_slice %6 {offsets = [64, 0], sizes = [8, 16], strides = [1, 1]} : vector<192x16xf32> to vector<8x16xf32>
    %11 = vector.extract_strided_slice %6 {offsets = [128, 0], sizes = [8, 16], strides = [1, 1]} : vector<192x16xf32> to vector<8x16xf32>
    %cst_6 = arith.constant dense<0.000000e+00> : vector<16x16xf32>
    %12 = tpu.matmul %9, %10, %cst_6 {dimension_numbers = #tpu.dot_dimension_numbers<[1], [0], [0], [1], [0, 0, 1, 1], [], []>} : vector<16x8xf32>, vector<8x16xf32>, vector<16x16xf32> -> vector<16x16xf32>
    %cst_7 = arith.constant dense<0xFF800000> : vector<16xf32>
    %13 = vector.multi_reduction <maximumf>, %12, %cst_7 [1] : vector<16x16xf32> to vector<16xf32>
    %14 = vector.shape_cast %13 : vector<16xf32> to vector<16x1xf32>
    %15 = vector.broadcast %14 : vector<16x1xf32> to vector<16x16xf32>
    %16 = arith.subf %12, %15 : vector<16x16xf32>
    %17 = math.exp %16 : vector<16x16xf32>
    %cst_8 = arith.constant dense<0.000000e+00> : vector<16xf32>
    %18 = vector.multi_reduction <add>, %17, %cst_8 [1] : vector<16x16xf32> to vector<16xf32>
    %19 = vector.shape_cast %18 : vector<16xf32> to vector<16x1xf32>
    %20 = tpu.reciprocal %19 {approx = true} : vector<16x1xf32> -> vector<16x1xf32>
    %21 = vector.broadcast %20 : vector<16x1xf32> to vector<16x16xf32>
    %22 = arith.mulf %17, %21 : vector<16x16xf32>
    %cst_9 = arith.constant dense<0.000000e+00> : vector<8x16xf32>
    %23 = tpu.matmul %11, %22, %cst_9 {dimension_numbers = #tpu.dot_dimension_numbers<[1], [0], [0], [1], [0, 0, 1, 1], [], []>} : vector<8x16xf32>, vector<16x16xf32>, vector<8x16xf32> -> vector<8x16xf32>
    %24 = vector.extract_strided_slice %8 {offsets = [0, 8], sizes = [16, 8], strides = [1, 1]} : vector<16x64xf32> to vector<16x8xf32>
    %25 = vector.extract_strided_slice %6 {offsets = [72, 0], sizes = [8, 16], strides = [1, 1]} : vector<192x16xf32> to vector<8x16xf32>
    %26 = vector.extract_strided_slice %6 {offsets = [136, 0], sizes = [8, 16], strides = [1, 1]} : vector<192x16xf32> to vector<8x16xf32>
    %cst_10 = arith.constant dense<0.000000e+00> : vector<16x16xf32>
    %27 = tpu.matmul %24, %25, %cst_10 {dimension_numbers = #tpu.dot_dimension_numbers<[1], [0], [0], [1], [0, 0, 1, 1], [], []>} : vector<16x8xf32>, vector<8x16xf32>, vector<16x16xf32> -> vector<16x16xf32>
    %cst_11 = arith.constant dense<0xFF800000> : vector<16xf32>
    %28 = vector.multi_reduction <maximumf>, %27, %cst_11 [1] : vector<16x16xf32> to vector<16xf32>
    %29 = vector.shape_cast %28 : vector<16xf32> to vector<16x1xf32>
    %30 = vector.broadcast %29 : vector<16x1xf32> to vector<16x16xf32>
    %31 = arith.subf %27, %30 : vector<16x16xf32>
    %32 = math.exp %31 : vector<16x16xf32>
    %cst_12 = arith.constant dense<0.000000e+00> : vector<16xf32>
    %33 = vector.multi_reduction <add>, %32, %cst_12 [1] : vector<16x16xf32> to vector<16xf32>
    %34 = vector.shape_cast %33 : vector<16xf32> to vector<16x1xf32>
    %35 = tpu.reciprocal %34 {approx = true} : vector<16x1xf32> -> vector<16x1xf32>
    %36 = vector.broadcast %35 : vector<16x1xf32> to vector<16x16xf32>
    %37 = arith.mulf %32, %36 : vector<16x16xf32>
    %cst_13 = arith.constant dense<0.000000e+00> : vector<8x16xf32>
    %38 = tpu.matmul %26, %37, %cst_13 {dimension_numbers = #tpu.dot_dimension_numbers<[1], [0], [0], [1], [0, 0, 1, 1], [], []>} : vector<8x16xf32>, vector<16x16xf32>, vector<8x16xf32> -> vector<8x16xf32>
    %39 = vector.extract_strided_slice %8 {offsets = [0, 16], sizes = [16, 8], strides = [1, 1]} : vector<16x64xf32> to vector<16x8xf32>
    %40 = vector.extract_strided_slice %6 {offsets = [80, 0], sizes = [8, 16], strides = [1, 1]} : vector<192x16xf32> to vector<8x16xf32>
    %41 = vector.extract_strided_slice %6 {offsets = [144, 0], sizes = [8, 16], strides = [1, 1]} : vector<192x16xf32> to vector<8x16xf32>
    %cst_14 = arith.constant dense<0.000000e+00> : vector<16x16xf32>
    %42 = tpu.matmul %39, %40, %cst_14 {dimension_numbers = #tpu.dot_dimension_numbers<[1], [0], [0], [1], [0, 0, 1, 1], [], []>} : vector<16x8xf32>, vector<8x16xf32>, vector<16x16xf32> -> vector<16x16xf32>
    %cst_15 = arith.constant dense<0xFF800000> : vector<16xf32>
    %43 = vector.multi_reduction <maximumf>, %42, %cst_15 [1] : vector<16x16xf32> to vector<16xf32>
    %44 = vector.shape_cast %43 : vector<16xf32> to vector<16x1xf32>
    %45 = vector.broadcast %44 : vector<16x1xf32> to vector<16x16xf32>
    %46 = arith.subf %42, %45 : vector<16x16xf32>
    %47 = math.exp %46 : vector<16x16xf32>
    %cst_16 = arith.constant dense<0.000000e+00> : vector<16xf32>
    %48 = vector.multi_reduction <add>, %47, %cst_16 [1] : vector<16x16xf32> to vector<16xf32>
    %49 = vector.shape_cast %48 : vector<16xf32> to vector<16x1xf32>
    %50 = tpu.reciprocal %49 {approx = true} : vector<16x1xf32> -> vector<16x1xf32>
    %51 = vector.broadcast %50 : vector<16x1xf32> to vector<16x16xf32>
    %52 = arith.mulf %47, %51 : vector<16x16xf32>
    %cst_17 = arith.constant dense<0.000000e+00> : vector<8x16xf32>
    %53 = tpu.matmul %41, %52, %cst_17 {dimension_numbers = #tpu.dot_dimension_numbers<[1], [0], [0], [1], [0, 0, 1, 1], [], []>} : vector<8x16xf32>, vector<16x16xf32>, vector<8x16xf32> -> vector<8x16xf32>
    %54 = vector.extract_strided_slice %8 {offsets = [0, 24], sizes = [16, 8], strides = [1, 1]} : vector<16x64xf32> to vector<16x8xf32>
    %55 = vector.extract_strided_slice %6 {offsets = [88, 0], sizes = [8, 16], strides = [1, 1]} : vector<192x16xf32> to vector<8x16xf32>
    %56 = vector.extract_strided_slice %6 {offsets = [152, 0], sizes = [8, 16], strides = [1, 1]} : vector<192x16xf32> to vector<8x16xf32>
    %cst_18 = arith.constant dense<0.000000e+00> : vector<16x16xf32>
    %57 = tpu.matmul %54, %55, %cst_18 {dimension_numbers = #tpu.dot_dimension_numbers<[1], [0], [0], [1], [0, 0, 1, 1], [], []>} : vector<16x8xf32>, vector<8x16xf32>, vector<16x16xf32> -> vector<16x16xf32>
    %cst_19 = arith.constant dense<0xFF800000> : vector<16xf32>
    %58 = vector.multi_reduction <maximumf>, %57, %cst_19 [1] : vector<16x16xf32> to vector<16xf32>
    %59 = vector.shape_cast %58 : vector<16xf32> to vector<16x1xf32>
    %60 = vector.broadcast %59 : vector<16x1xf32> to vector<16x16xf32>
    %61 = arith.subf %57, %60 : vector<16x16xf32>
    %62 = math.exp %61 : vector<16x16xf32>
    %cst_20 = arith.constant dense<0.000000e+00> : vector<16xf32>
    %63 = vector.multi_reduction <add>, %62, %cst_20 [1] : vector<16x16xf32> to vector<16xf32>
    %64 = vector.shape_cast %63 : vector<16xf32> to vector<16x1xf32>
    %65 = tpu.reciprocal %64 {approx = true} : vector<16x1xf32> -> vector<16x1xf32>
    %66 = vector.broadcast %65 : vector<16x1xf32> to vector<16x16xf32>
    %67 = arith.mulf %62, %66 : vector<16x16xf32>
    %cst_21 = arith.constant dense<0.000000e+00> : vector<8x16xf32>
    %68 = tpu.matmul %56, %67, %cst_21 {dimension_numbers = #tpu.dot_dimension_numbers<[1], [0], [0], [1], [0, 0, 1, 1], [], []>} : vector<8x16xf32>, vector<16x16xf32>, vector<8x16xf32> -> vector<8x16xf32>
    %69 = vector.extract_strided_slice %8 {offsets = [0, 32], sizes = [16, 8], strides = [1, 1]} : vector<16x64xf32> to vector<16x8xf32>
    %70 = vector.extract_strided_slice %6 {offsets = [96, 0], sizes = [8, 16], strides = [1, 1]} : vector<192x16xf32> to vector<8x16xf32>
    %71 = vector.extract_strided_slice %6 {offsets = [160, 0], sizes = [8, 16], strides = [1, 1]} : vector<192x16xf32> to vector<8x16xf32>
    %cst_22 = arith.constant dense<0.000000e+00> : vector<16x16xf32>
    %72 = tpu.matmul %69, %70, %cst_22 {dimension_numbers = #tpu.dot_dimension_numbers<[1], [0], [0], [1], [0, 0, 1, 1], [], []>} : vector<16x8xf32>, vector<8x16xf32>, vector<16x16xf32> -> vector<16x16xf32>
    %cst_23 = arith.constant dense<0xFF800000> : vector<16xf32>
    %73 = vector.multi_reduction <maximumf>, %72, %cst_23 [1] : vector<16x16xf32> to vector<16xf32>
    %74 = vector.shape_cast %73 : vector<16xf32> to vector<16x1xf32>
    %75 = vector.broadcast %74 : vector<16x1xf32> to vector<16x16xf32>
    %76 = arith.subf %72, %75 : vector<16x16xf32>
    %77 = math.exp %76 : vector<16x16xf32>
    %cst_24 = arith.constant dense<0.000000e+00> : vector<16xf32>
    %78 = vector.multi_reduction <add>, %77, %cst_24 [1] : vector<16x16xf32> to vector<16xf32>
    %79 = vector.shape_cast %78 : vector<16xf32> to vector<16x1xf32>
    %80 = tpu.reciprocal %79 {approx = true} : vector<16x1xf32> -> vector<16x1xf32>
    %81 = vector.broadcast %80 : vector<16x1xf32> to vector<16x16xf32>
    %82 = arith.mulf %77, %81 : vector<16x16xf32>
    %cst_25 = arith.constant dense<0.000000e+00> : vector<8x16xf32>
    %83 = tpu.matmul %71, %82, %cst_25 {dimension_numbers = #tpu.dot_dimension_numbers<[1], [0], [0], [1], [0, 0, 1, 1], [], []>} : vector<8x16xf32>, vector<16x16xf32>, vector<8x16xf32> -> vector<8x16xf32>
    %84 = vector.extract_strided_slice %8 {offsets = [0, 40], sizes = [16, 8], strides = [1, 1]} : vector<16x64xf32> to vector<16x8xf32>
    %85 = vector.extract_strided_slice %6 {offsets = [104, 0], sizes = [8, 16], strides = [1, 1]} : vector<192x16xf32> to vector<8x16xf32>
    %86 = vector.extract_strided_slice %6 {offsets = [168, 0], sizes = [8, 16], strides = [1, 1]} : vector<192x16xf32> to vector<8x16xf32>
    %cst_26 = arith.constant dense<0.000000e+00> : vector<16x16xf32>
    %87 = tpu.matmul %84, %85, %cst_26 {dimension_numbers = #tpu.dot_dimension_numbers<[1], [0], [0], [1], [0, 0, 1, 1], [], []>} : vector<16x8xf32>, vector<8x16xf32>, vector<16x16xf32> -> vector<16x16xf32>
    %cst_27 = arith.constant dense<0xFF800000> : vector<16xf32>
    %88 = vector.multi_reduction <maximumf>, %87, %cst_27 [1] : vector<16x16xf32> to vector<16xf32>
    %89 = vector.shape_cast %88 : vector<16xf32> to vector<16x1xf32>
    %90 = vector.broadcast %89 : vector<16x1xf32> to vector<16x16xf32>
    %91 = arith.subf %87, %90 : vector<16x16xf32>
    %92 = math.exp %91 : vector<16x16xf32>
    %cst_28 = arith.constant dense<0.000000e+00> : vector<16xf32>
    %93 = vector.multi_reduction <add>, %92, %cst_28 [1] : vector<16x16xf32> to vector<16xf32>
    %94 = vector.shape_cast %93 : vector<16xf32> to vector<16x1xf32>
    %95 = tpu.reciprocal %94 {approx = true} : vector<16x1xf32> -> vector<16x1xf32>
    %96 = vector.broadcast %95 : vector<16x1xf32> to vector<16x16xf32>
    %97 = arith.mulf %92, %96 : vector<16x16xf32>
    %cst_29 = arith.constant dense<0.000000e+00> : vector<8x16xf32>
    %98 = tpu.matmul %86, %97, %cst_29 {dimension_numbers = #tpu.dot_dimension_numbers<[1], [0], [0], [1], [0, 0, 1, 1], [], []>} : vector<8x16xf32>, vector<16x16xf32>, vector<8x16xf32> -> vector<8x16xf32>
    %99 = vector.extract_strided_slice %8 {offsets = [0, 48], sizes = [16, 8], strides = [1, 1]} : vector<16x64xf32> to vector<16x8xf32>
    %100 = vector.extract_strided_slice %6 {offsets = [112, 0], sizes = [8, 16], strides = [1, 1]} : vector<192x16xf32> to vector<8x16xf32>
    %101 = vector.extract_strided_slice %6 {offsets = [176, 0], sizes = [8, 16], strides = [1, 1]} : vector<192x16xf32> to vector<8x16xf32>
    %cst_30 = arith.constant dense<0.000000e+00> : vector<16x16xf32>
    %102 = tpu.matmul %99, %100, %cst_30 {dimension_numbers = #tpu.dot_dimension_numbers<[1], [0], [0], [1], [0, 0, 1, 1], [], []>} : vector<16x8xf32>, vector<8x16xf32>, vector<16x16xf32> -> vector<16x16xf32>
    %cst_31 = arith.constant dense<0xFF800000> : vector<16xf32>
    %103 = vector.multi_reduction <maximumf>, %102, %cst_31 [1] : vector<16x16xf32> to vector<16xf32>
    %104 = vector.shape_cast %103 : vector<16xf32> to vector<16x1xf32>
    %105 = vector.broadcast %104 : vector<16x1xf32> to vector<16x16xf32>
    %106 = arith.subf %102, %105 : vector<16x16xf32>
    %107 = math.exp %106 : vector<16x16xf32>
    %cst_32 = arith.constant dense<0.000000e+00> : vector<16xf32>
    %108 = vector.multi_reduction <add>, %107, %cst_32 [1] : vector<16x16xf32> to vector<16xf32>
    %109 = vector.shape_cast %108 : vector<16xf32> to vector<16x1xf32>
    %110 = tpu.reciprocal %109 {approx = true} : vector<16x1xf32> -> vector<16x1xf32>
    %111 = vector.broadcast %110 : vector<16x1xf32> to vector<16x16xf32>
    %112 = arith.mulf %107, %111 : vector<16x16xf32>
    %cst_33 = arith.constant dense<0.000000e+00> : vector<8x16xf32>
    %113 = tpu.matmul %101, %112, %cst_33 {dimension_numbers = #tpu.dot_dimension_numbers<[1], [0], [0], [1], [0, 0, 1, 1], [], []>} : vector<8x16xf32>, vector<16x16xf32>, vector<8x16xf32> -> vector<8x16xf32>
    %114 = vector.extract_strided_slice %8 {offsets = [0, 56], sizes = [16, 8], strides = [1, 1]} : vector<16x64xf32> to vector<16x8xf32>
    %115 = vector.extract_strided_slice %6 {offsets = [120, 0], sizes = [8, 16], strides = [1, 1]} : vector<192x16xf32> to vector<8x16xf32>
    %116 = vector.extract_strided_slice %6 {offsets = [184, 0], sizes = [8, 16], strides = [1, 1]} : vector<192x16xf32> to vector<8x16xf32>
    %cst_34 = arith.constant dense<0.000000e+00> : vector<16x16xf32>
    %117 = tpu.matmul %114, %115, %cst_34 {dimension_numbers = #tpu.dot_dimension_numbers<[1], [0], [0], [1], [0, 0, 1, 1], [], []>} : vector<16x8xf32>, vector<8x16xf32>, vector<16x16xf32> -> vector<16x16xf32>
    %cst_35 = arith.constant dense<0xFF800000> : vector<16xf32>
    %118 = vector.multi_reduction <maximumf>, %117, %cst_35 [1] : vector<16x16xf32> to vector<16xf32>
    %119 = vector.shape_cast %118 : vector<16xf32> to vector<16x1xf32>
    %120 = vector.broadcast %119 : vector<16x1xf32> to vector<16x16xf32>
    %121 = arith.subf %117, %120 : vector<16x16xf32>
    %122 = math.exp %121 : vector<16x16xf32>
    %cst_36 = arith.constant dense<0.000000e+00> : vector<16xf32>
    %123 = vector.multi_reduction <add>, %122, %cst_36 [1] : vector<16x16xf32> to vector<16xf32>
    %124 = vector.shape_cast %123 : vector<16xf32> to vector<16x1xf32>
    %125 = tpu.reciprocal %124 {approx = true} : vector<16x1xf32> -> vector<16x1xf32>
    %126 = vector.broadcast %125 : vector<16x1xf32> to vector<16x16xf32>
    %127 = arith.mulf %122, %126 : vector<16x16xf32>
    %cst_37 = arith.constant dense<0.000000e+00> : vector<8x16xf32>
    %128 = tpu.matmul %116, %127, %cst_37 {dimension_numbers = #tpu.dot_dimension_numbers<[1], [0], [0], [1], [0, 0, 1, 1], [], []>} : vector<8x16xf32>, vector<16x16xf32>, vector<8x16xf32> -> vector<8x16xf32>
    %129 = tpu.concatenate %23, %38, %53, %68, %83, %98, %113, %128 in 0 : vector<8x16xf32>, vector<8x16xf32>, vector<8x16xf32>, vector<8x16xf32>, vector<8x16xf32>, vector<8x16xf32>, vector<8x16xf32>, vector<8x16xf32> -> vector<64x16xf32>
    %c0_38 = arith.constant 0 : index
    %c0_39 = arith.constant 0 : index
    %c0_40 = arith.constant 0 : index
    %130 = vector.load %arg4[%c0_38, %c0_39, %c0_40] : memref<1x64x16xf32, #tpu.memory_space<vmem>>, vector<1x64x16xf32>
    %131 = vector.shape_cast %130 : vector<1x64x16xf32> to vector<64x16xf32>
    %132 = vector.shape_cast %129 : vector<64x16xf32> to vector<1x64x16xf32>
    tpu.vector_store %arg4[%c0_38, %c0_39, %c0_40], %132 {strides = array<i32>} : memref<1x64x16xf32, #tpu.memory_space<vmem>>, vector<1x64x16xf32>,
    return
  }
  func.func @transform_0(%arg0: i32) -> (i32, i32, i32) {
    %c0_i32 = arith.constant 0 : i32
    %c0_i32_0 = arith.constant 0 : i32
    %c0_i32_1 = arith.constant 0 : i32
    return %arg0, %c0_i32, %c0_i32_0 : i32, i32, i32
  }
  func.func @transform_1(%arg0: i32) -> (i32, i32) {
    %c0_i32 = arith.constant 0 : i32
    %c0_i32_0 = arith.constant 0 : i32
    %c0_i32_1 = arith.constant 0 : i32
    return %c0_i32, %c0_i32_0 : i32, i32
  }
  func.func @transform_2(%arg0: i32) -> (i32, i32) {
    %c0_i32 = arith.constant 0 : i32
    %c0_i32_0 = arith.constant 0 : i32
    %c0_i32_1 = arith.constant 0 : i32
    return %c0_i32, %c0_i32_0 : i32, i32
  }
  func.func @transform_3(%arg0: i32) -> (i32, i32, i32) {
    %c0_i32 = arith.constant 0 : i32
    %c0_i32_0 = arith.constant 0 : i32
    %c0_i32_1 = arith.constant 0 : i32
    return %arg0, %c0_i32, %c0_i32_0 : i32, i32, i32
  }
}

</mosaic_0001>

<llo_original>
// kernel: attention_module_forward.1
$region0: #{attention_module_forward.1}
  #allocation0 [shape = 'u32[]', space=smem, size = 0x4, offset = 0x4, fixed_abs, tag = 'smem constant byte address 0x4 - core index']
  #allocation1 [shape = 'u32[144,128]{1,0:T(1,128)}', space=vmem, size = 0x12000, scoped, tag = 'internal scratch']
  %s0 = inlined_call_operand.vmem [shape: f32[2,64,16], index: 0, kind: input, shape index: {}]
  %s1 = inlined_call_operand.vmem [shape: f32[192,64], index: 1, kind: input, shape index: {}]
  %s2 = inlined_call_operand.vmem [shape: f32[192,1], index: 2, kind: input, shape index: {}]
  %s3 = inlined_call_operand.vmem [shape: f32[2,64,16], index: 3, kind: output, shape index: {}]
  %s4 = sld [smem:[#allocation0]]
  $region45: #{attention_module_forward.1} parent=0
    _
  %s6 = ssub.s32 1, %s4
  %s7 = scalar_select 0, %s6, %s4
  loop: start=0, step=1, limit=4
  $region2: #{attention_module_forward.1} parent=0 // loop_pre_header
    _
  $region3: #{attention_module_forward.1} parent=0 // loop_header
    %s9 = sphi 0, %s13
    %p10 = scmp.ge.s32.totalorder %s9, 4
    %s19 = sphi 0, %s21
    %s22 = sphi 0, %s19
    %s23 = sphi 0, %s22
    %s39 = sphi 0, %s23
    %s43 = sphi 0, %s43
    %s45 = sphi 0, %s43
    %s46 = sphi 0, %s45
    %s60 = sphi 0, %s46
    %s64 = sphi 0, %s64
    %s66 = sphi 0, %s64
    %s67 = sphi 0, %s66
    %s81 = sphi 0, %s67
    %s87 = sphi 0, %s89
    %s90 = sphi 0, %s87
    %s91 = sphi 0, %s90
    %s107 = sphi 0, %s91
  $region4: #{attention_module_forward.1} parent=0 // loop_header_branch
    %12 = sbr.rel (%p10) target = $region8
  $region5: #{attention_module_forward.1} parent=0 // loop_body
    %s14 = ssub.s32 %s9, 1
    %s15 = ssub.s32 %s9, 2
    %s16 = sadd.s32 %s9, 1
    %s17 = ssub.s32 %s9, %s16
    %p18 = scmp.eq.s32.totalorder %s17, 0
    %s20 = sadd.s32 %s19, 1
    %s21 = scalar_select %p18, %s19, %s20
    %p24 = pneg %p18
    %p25 = scmp.eq.s32.totalorder %s9, 1
    %p26 = por %p24, %p25
    %p27 = scmp.ne.s32.totalorder %s19, %s22
    %p28 = scmp.eq.s32.totalorder %s9, 0
    %p29 = por %p27, %p28
    %p30 = scmp.ne.s32.totalorder %s19, %s22
    %p31 = scmp.eq.s32.totalorder %s14, 1
    %p32 = por %p30, %p31
    %p33 = scmp.ne.s32.totalorder %s22, %s23
    %p34 = scmp.eq.s32.totalorder %s14, 0
    %p35 = por %p33, %p34
    %p36 = scmp.ne.s32.totalorder %s22, %s23
    %p37 = scmp.eq.s32.totalorder %s15, 1
    %p38 = por %p36, %p37
    %p40 = scmp.ne.s32.totalorder %s23, %s39
    %p41 = scmp.eq.s32.totalorder %s15, 0
    %p42 = por %p40, %p41
    %s44 = sadd.s32 %s43, 1
    %p47 = scmp.eq.s32.totalorder %s9, 1
    %p48 = scmp.ne.s32.totalorder %s43, %s45
    %p49 = scmp.eq.s32.totalorder %s9, 0
    %p50 = por %p48, %p49
    %p51 = scmp.ne.s32.totalorder %s43, %s45
    %p52 = scmp.eq.s32.totalorder %s14, 1
    %p53 = por %p51, %p52
    %p54 = scmp.ne.s32.totalorder %s45, %s46
    %p55 = scmp.eq.s32.totalorder %s14, 0
    %p56 = por %p54, %p55
    %p57 = scmp.ne.s32.totalorder %s45, %s46
    %p58 = scmp.eq.s32.totalorder %s15, 1
    %p59 = por %p57, %p58
    %p61 = scmp.ne.s32.totalorder %s46, %s60
    %p62 = scmp.eq.s32.totalorder %s15, 0
    %p63 = por %p61, %p62
    %s65 = sadd.s32 %s64, 1
    %p68 = scmp.eq.s32.totalorder %s9, 1
    %p69 = scmp.ne.s32.totalorder %s64, %s66
    %p70 = scmp.eq.s32.totalorder %s9, 0
    %p71 = por %p69, %p70
    %p72 = scmp.ne.s32.totalorder %s64, %s66
    %p73 = scmp.eq.s32.totalorder %s14, 1
    %p74 = por %p72, %p73
    %p75 = scmp.ne.s32.totalorder %s66, %s67
    %p76 = scmp.eq.s32.totalorder %s14, 0
    %p77 = por %p75, %p76
    %p78 = scmp.ne.s32.totalorder %s66, %s67
    %p79 = scmp.eq.s32.totalorder %s15, 1
    %p80 = por %p78, %p79
    %p82 = scmp.ne.s32.totalorder %s67, %s81
    %p83 = scmp.eq.s32.totalorder %s15, 0
    %p84 = por %p82, %p83
    %s85 = ssub.s32 %s9, %s16
    %p86 = scmp.eq.s32.totalorder %s85, 0
    %s88 = sadd.s32 %s87, 1
    %s89 = scalar_select %p86, %s87, %s88
    %p92 = pneg %p86
    %p93 = scmp.eq.s32.totalorder %s9, 1
    %p94 = por %p92, %p93
    %p95 = scmp.ne.s32.totalorder %s87, %s90
    %p96 = scmp.eq.s32.totalorder %s9, 0
    %p97 = por %p95, %p96
    %p98 = scmp.ne.s32.totalorder %s87, %s90
    %p99 = scmp.eq.s32.totalorder %s14, 1
    %p100 = por %p98, %p99
    %p101 = scmp.ne.s32.totalorder %s90, %s91
    %p102 = scmp.eq.s32.totalorder %s14, 0
    %p103 = por %p101, %p102
    %p104 = scmp.ne.s32.totalorder %s90, %s91
    %p105 = scmp.eq.s32.totalorder %s15, 1
    %p106 = por %p104, %p105
    %p108 = scmp.ne.s32.totalorder %s91, %s107
    %p109 = scmp.eq.s32.totalorder %s15, 0
    %p110 = por %p108, %p109
    %p111 = scmp.le.s32.totalorder 1, %s9
    %p112 = scmp.lt.s32.totalorder %s9, 3
    %p113 = pnand %p111, %p112
    %p114 = pneg %p113
    // Predicated region
    $region9: #{attention_module_forward.1} parent=5 // pred_check
      _
    $region10: #{attention_module_forward.1} parent=5 // pred_check_branch
      %116 = sbr.rel (%p113) target = $region12
    $region11: #{attention_module_forward.1} parent=5 // pred_region
      %s117 = ssub.s32 %s9, 1
      // Predicated region
      $region13: #{attention_module_forward.1} parent=11 // pred_check
        %p118 = pneg %p56
      $region14: #{attention_module_forward.1} parent=11 // pred_check_branch
        %120 = sbr.rel (%p118) target = $region16
      $region15: #{attention_module_forward.1} parent=11 // pred_region
        _
      $region16: #{attention_module_forward.1} parent=11 // pred_fallthru
        _
      // Predicated region
      $region17: #{attention_module_forward.1} parent=11 // pred_check
        %p121 = pneg %p77
      $region18: #{attention_module_forward.1} parent=11 // pred_check_branch
        %123 = sbr.rel (%p121) target = $region20
      $region19: #{attention_module_forward.1} parent=11 // pred_region
        _
      $region20: #{attention_module_forward.1} parent=11 // pred_fallthru
        _
    $region12: #{attention_module_forward.1} parent=5 // pred_fallthru
      _
    %p124 = scmp.lt.s32.totalorder %s9, 2
    // Predicated region
    $region21: #{attention_module_forward.1} parent=5 // pred_check
      %p125 = pneg %p124
    $region22: #{attention_module_forward.1} parent=5 // pred_check_branch
      %127 = sbr.rel (%p125) target = $region24
    $region23: #{attention_module_forward.1} parent=5 // pred_region
      // Predicated region
      $region25: #{attention_module_forward.1} parent=23 // pred_check
        %p128 = pneg %p29
      $region26: #{attention_module_forward.1} parent=23 // pred_check_branch
        %130 = sbr.rel (%p128) target = $region28
      $region27: #{attention_module_forward.1} parent=23 // pred_region
        %p131 = scmp.lt.s32.totalorder %s9, 1
        %s132 = scalar_select %p131, %s9, 1
        %s133 = smul.addr %s132, 8
        %s134 = smul.addr %s133, 8
        %s135 = scalar_lea.vmem %s0, %s134
      $region28: #{attention_module_forward.1} parent=23 // pred_fallthru
        _
    $region24: #{attention_module_forward.1} parent=5 // pred_fallthru
      _
    %p136 = scmp.le.s32.totalorder 1, %s9
    %p137 = scmp.lt.s32.totalorder %s9, 3
    %p138 = pnand %p136, %p137
    %p139 = pneg %p138
    // Predicated region
    $region29: #{attention_module_forward.1} parent=5 // pred_check
      _
    $region30: #{attention_module_forward.1} parent=5 // pred_check_branch
      %141 = sbr.rel (%p138) target = $region32
    $region31: #{attention_module_forward.1} parent=5 // pred_region
      %s142 = ssub.s32 %s9, 1
      %p143 = scmp.lt.s32.totalorder %s14, 1
      %s144 = scalar_select %p143, %s14, 1
      %s145 = smul.addr %s144, 8
      %s146 = smul.addr %s145, 8
      %s147 = scalar_lea.vmem %s0, %s146
      %p148 = pneg %p35
      %p149 = pneg %p32
      %p150 = pneg %p56
      %p151 = pneg %p53
      %p152 = pneg %p77
      %p153 = pneg %p74
      %p154 = pneg %p103
      %p155 = pneg %p100
      %p156 = scmp.lt.s32.totalorder %s14, 1
      %s157 = scalar_select %p156, %s14, 1
      %s158 = smul.addr %s157, 8
      %s159 = smul.addr %s158, 8
      %s160 = scalar_lea.vmem %s3, %s159
      %p161 = scmp.lt.s32.totalorder %s14, 1
      %s162 = scalar_select %p161, %s14, 1
      %s163 = smul.addr %s162, 8
      %s164 = smul.addr %s163, 8
      %s165 = scalar_lea.vmem %s0, %s164
      %p166 = scmp.lt.s32.totalorder %s14, 1
      %s167 = scalar_select %p166, %s14, 1
      %s168 = smul.addr %s167, 8
      %s169 = smul.addr %s168, 8
      %s170 = scalar_lea.vmem %s3, %s169
      %v171 = vld [vmem:[%s1] sm:$0xff]
      %v172 = vld [vmem:[%s1 + $0x8] sm:$0xff]
      %v173 = vld [vmem:[%s1 + $0x10] sm:$0xff]
      %v174 = vld [vmem:[%s1 + $0x18] sm:$0xff]
      %v175 = vld [vmem:[%s1 + $0x20] sm:$0xff]
      %v176 = vld [vmem:[%s1 + $0x28] sm:$0xff]
      %v177 = vld [vmem:[%s1 + $0x30] sm:$0xff]
      %v178 = vld [vmem:[%s1 + $0x38] sm:$0xff]
      %v179 = vld [vmem:[%s1 + $0x40] sm:$0xff]
      %v180 = vld [vmem:[%s1 + $0x48] sm:$0xff]
      %v181 = vld [vmem:[%s1 + $0x50] sm:$0xff]
      %v182 = vld [vmem:[%s1 + $0x58] sm:$0xff]
      %v183 = vld [vmem:[%s1 + $0x60] sm:$0xff]
      %v184 = vld [vmem:[%s1 + $0x68] sm:$0xff]
      %v185 = vld [vmem:[%s1 + $0x70] sm:$0xff]
      %v186 = vld [vmem:[%s1 + $0x78] sm:$0xff]
      %v187 = vld [vmem:[%s1 + $0x80] sm:$0xff]
      %v188 = vld [vmem:[%s1 + $0x88] sm:$0xff]
      %v189 = vld [vmem:[%s1 + $0x90] sm:$0xff]
      %v190 = vld [vmem:[%s1 + $0x98] sm:$0xff]
      %v191 = vld [vmem:[%s1 + $0xa0] sm:$0xff]
      %v192 = vld [vmem:[%s1 + $0xa8] sm:$0xff]
      %v193 = vld [vmem:[%s1 + $0xb0] sm:$0xff]
      %v194 = vld [vmem:[%s1 + $0xb8] sm:$0xff]
      %v195 = vld [vmem:[%s165] sm:$0xff]
      %v196 = vld [vmem:[%s165 + $0x8] sm:$0xff]
      %v197 = vld [vmem:[%s165 + $0x10] sm:$0xff]
      %v198 = vld [vmem:[%s165 + $0x18] sm:$0xff]
      %v199 = vld [vmem:[%s165 + $0x20] sm:$0xff]
      %v200 = vld [vmem:[%s165 + $0x28] sm:$0xff]
      %v201 = vld [vmem:[%s165 + $0x30] sm:$0xff]
      %v202 = vld [vmem:[%s165 + $0x38] sm:$0xff]
      %v203 = vld [vmem:[%s2] sm:$0xff]
      %v204 = vld [vmem:[%s2 + $0x8] sm:$0xff]
      %v205 = vld [vmem:[%s2 + $0x10] sm:$0xff]
      %v206 = vld [vmem:[%s2 + $0x18] sm:$0xff]
      %v207 = vld [vmem:[%s2 + $0x20] sm:$0xff]
      %v208 = vld [vmem:[%s2 + $0x28] sm:$0xff]
      %v209 = vld [vmem:[%s2 + $0x30] sm:$0xff]
      %v210 = vld [vmem:[%s2 + $0x38] sm:$0xff]
      %v211 = vld [vmem:[%s2 + $0x40] sm:$0xff]
      %v212 = vld [vmem:[%s2 + $0x48] sm:$0xff]
      %v213 = vld [vmem:[%s2 + $0x50] sm:$0xff]
      %v214 = vld [vmem:[%s2 + $0x58] sm:$0xff]
      %v215 = vld [vmem:[%s2 + $0x60] sm:$0xff]
      %v216 = vld [vmem:[%s2 + $0x68] sm:$0xff]
      %v217 = vld [vmem:[%s2 + $0x70] sm:$0xff]
      %v218 = vld [vmem:[%s2 + $0x78] sm:$0xff]
      %v219 = vld [vmem:[%s2 + $0x80] sm:$0xff]
      %v220 = vld [vmem:[%s2 + $0x88] sm:$0xff]
      %v221 = vld [vmem:[%s2 + $0x90] sm:$0xff]
      %v222 = vld [vmem:[%s2 + $0x98] sm:$0xff]
      %v223 = vld [vmem:[%s2 + $0xa0] sm:$0xff]
      %v224 = vld [vmem:[%s2 + $0xa8] sm:$0xff]
      %v225 = vld [vmem:[%s2 + $0xb0] sm:$0xff]
      %v226 = vld [vmem:[%s2 + $0xb8] sm:$0xff]
      %228 = vset.pattern.permute.xlu0 0
      %229 = vperm.xlu0 %228, %v203
      %v230 = vpop.permute.xlu0 %229
      %233 = vset.pattern.permute.xlu0 0
      %234 = vperm.xlu0 %233, %v204
      %v235 = vpop.permute.xlu0 %234
      %238 = vset.pattern.permute.xlu0 0
      %239 = vperm.xlu0 %238, %v205
      %v240 = vpop.permute.xlu0 %239
      %243 = vset.pattern.permute.xlu0 0
      %244 = vperm.xlu0 %243, %v206
      %v245 = vpop.permute.xlu0 %244
      %248 = vset.pattern.permute.xlu0 0
      %249 = vperm.xlu0 %248, %v207
      %v250 = vpop.permute.xlu0 %249
      %253 = vset.pattern.permute.xlu0 0
      %254 = vperm.xlu0 %253, %v208
      %v255 = vpop.permute.xlu0 %254
      %258 = vset.pattern.permute.xlu0 0
      %259 = vperm.xlu0 %258, %v209
      %v260 = vpop.permute.xlu0 %259
      %263 = vset.pattern.permute.xlu0 0
      %264 = vperm.xlu0 %263, %v210
      %v265 = vpop.permute.xlu0 %264
      %268 = vset.pattern.permute.xlu0 0
      %269 = vperm.xlu0 %268, %v211
      %v270 = vpop.permute.xlu0 %269
      %273 = vset.pattern.permute.xlu0 0
      %274 = vperm.xlu0 %273, %v212
      %v275 = vpop.permute.xlu0 %274
      %278 = vset.pattern.permute.xlu0 0
      %279 = vperm.xlu0 %278, %v213
      %v280 = vpop.permute.xlu0 %279
      %283 = vset.pattern.permute.xlu0 0
      %284 = vperm.xlu0 %283, %v214
      %v285 = vpop.permute.xlu0 %284
      %288 = vset.pattern.permute.xlu0 0
      %289 = vperm.xlu0 %288, %v215
      %v290 = vpop.permute.xlu0 %289
      %293 = vset.pattern.permute.xlu0 0
      %294 = vperm.xlu0 %293, %v216
      %v295 = vpop.permute.xlu0 %294
      %298 = vset.pattern.permute.xlu0 0
      %299 = vperm.xlu0 %298, %v217
      %v300 = vpop.permute.xlu0 %299
      %303 = vset.pattern.permute.xlu0 0
      %304 = vperm.xlu0 %303, %v218
      %v305 = vpop.permute.xlu0 %304
      %308 = vset.pattern.permute.xlu0 0
      %309 = vperm.xlu0 %308, %v219
      %v310 = vpop.permute.xlu0 %309
      %313 = vset.pattern.permute.xlu0 0
      %314 = vperm.xlu0 %313, %v220
      %v315 = vpop.permute.xlu0 %314
      %318 = vset.pattern.permute.xlu0 0
      %319 = vperm.xlu0 %318, %v221
      %v320 = vpop.permute.xlu0 %319
      %323 = vset.pattern.permute.xlu0 0
      %324 = vperm.xlu0 %323, %v222
      %v325 = vpop.permute.xlu0 %324
      %328 = vset.pattern.permute.xlu0 0
      %329 = vperm.xlu0 %328, %v223
      %v330 = vpop.permute.xlu0 %329
      %333 = vset.pattern.permute.xlu0 0
      %334 = vperm.xlu0 %333, %v224
      %v335 = vpop.permute.xlu0 %334
      %338 = vset.pattern.permute.xlu0 0
      %339 = vperm.xlu0 %338, %v225
      %v340 = vpop.permute.xlu0 %339
      %343 = vset.pattern.permute.xlu0 0
      %344 = vperm.xlu0 %343, %v226
      %v345 = vpop.permute.xlu0 %344
      %vm347 = vcmask 523264
      %v349 = vsel %vm347, %v171, 0
      %v352 = vsel %vm347, %v172, 0
      %v355 = vsel %vm347, %v173, 0
      %v358 = vsel %vm347, %v174, 0
      %v361 = vsel %vm347, %v175, 0
      %v364 = vsel %vm347, %v176, 0
      %v367 = vsel %vm347, %v177, 0
      %v370 = vsel %vm347, %v178, 0
      %v373 = vsel %vm347, %v179, 0
      %v376 = vsel %vm347, %v180, 0
      %v379 = vsel %vm347, %v181, 0
      %v382 = vsel %vm347, %v182, 0
      %v385 = vsel %vm347, %v183, 0
      %v388 = vsel %vm347, %v184, 0
      %v391 = vsel %vm347, %v185, 0
      %v394 = vsel %vm347, %v186, 0
      %v397 = vsel %vm347, %v187, 0
      %v400 = vsel %vm347, %v188, 0
      %v403 = vsel %vm347, %v189, 0
      %v406 = vsel %vm347, %v190, 0
      %v409 = vsel %vm347, %v191, 0
      %v412 = vsel %vm347, %v192, 0
      %v415 = vsel %vm347, %v193, 0
      %v418 = vsel %vm347, %v194, 0
      %420 = vmatprep.subr.mxu0 0.0
      %421 = vmatpush1.msra.mxu0 %v195
      %422 = vmatprep.subr.mxu0 0.0
      %423 = vmatpush1.msra.mxu0 %v196
      %424 = vmatprep.subr.mxu0 0.0
      %425 = vmatpush1.msra.mxu0 %v197
      %426 = vmatprep.subr.mxu0 0.0
      %427 = vmatpush1.msra.mxu0 %v198
      %428 = vmatprep.subr.mxu0 0.0
      %429 = vmatpush1.msra.mxu0 %v199
      %430 = vmatprep.subr.mxu0 0.0
      %431 = vmatpush1.msra.mxu0 %v200
      %432 = vmatprep.subr.mxu0 0.0
      %433 = vmatpush1.msra.mxu0 %v201
      %434 = vmatprep.subr.mxu0 0.0
      %435 = vmatpush1.msra.mxu0 %v202
      %436 = vmatprep.subr.mxu0 0.0
      %437 = vmatpush1.msra.mxu0 0.0
      %438 = vmatprep.subr.mxu0 0.0
      %439 = vmatpush1.msra.mxu0 0.0
      %440 = vmatprep.subr.mxu0 0.0
      %441 = vmatpush1.msra.mxu0 0.0
      %442 = vmatprep.subr.mxu0 0.0
      %443 = vmatpush1.msra.mxu0 0.0
      %444 = vmatprep.subr.mxu0 0.0
      %445 = vmatpush1.msra.mxu0 0.0
      %446 = vmatprep.subr.mxu0 0.0
      %447 = vmatpush1.msra.mxu0 0.0
      %448 = vmatprep.subr.mxu0 0.0
      %449 = vmatpush1.msra.mxu0 0.0
      %450 = vmatprep.subr.mxu0 0.0
      %451 = vmatpush1.msra.mxu0 0.0
      %452 = vmatprep.subr.mxu0 0.0
      %453 = vmatpush1.msra.mxu0 0.0
      %454 = vmatprep.subr.mxu0 0.0
      %455 = vmatpush1.msra.mxu0 0.0
      %456 = vmatprep.subr.mxu0 0.0
      %457 = vmatpush1.msra.mxu0 0.0
      %458 = vmatprep.subr.mxu0 0.0
      %459 = vmatpush1.msra.mxu0 0.0
      %460 = vmatprep.subr.mxu0 0.0
      %461 = vmatpush1.msra.mxu0 0.0
      %462 = vmatprep.subr.mxu0 0.0
      %463 = vmatpush1.msra.mxu0 0.0
      %464 = vmatprep.subr.mxu0 0.0
      %465 = vmatpush1.msra.mxu0 0.0
      %466 = vmatprep.subr.mxu0 0.0
      %467 = vmatpush1.msra.mxu0 0.0
      %468 = vmatprep.subr.mxu0 0.0
      %469 = vmatpush1.msra.mxu0 0.0
      %470 = vmatprep.subr.mxu0 0.0
      %471 = vmatpush1.msra.mxu0 0.0
      %472 = vmatprep.subr.mxu0 0.0
      %473 = vmatpush1.msra.mxu0 0.0
      %474 = vmatprep.subr.mxu0 0.0
      %475 = vmatpush1.msra.mxu0 0.0
      %476 = vmatprep.subr.mxu0 0.0
      %477 = vmatpush1.msra.mxu0 0.0
      %478 = vmatprep.subr.mxu0 0.0
      %479 = vmatpush1.msra.mxu0 0.0
      %480 = vmatprep.subr.mxu0 0.0
      %481 = vmatpush1.msra.mxu0 0.0
      %482 = vmatprep.subr.mxu0 0.0
      %483 = vmatpush1.msra.mxu0 0.0
      %484 = vmatprep.mubr.f32.mxu0 0.0
      %485 = vmatmul.mubr.f32.gmra.mrb[0].mxu0 %v349
      %v486 = vpop.f32.mrb[0].mxu0
      %v487 = vadd.f32 %v230, %v486
      %v488 = vpop.f32.mrb[0].mxu0
      %489 = vmatprep.mubr.f32.mxu0 0.0
      %490 = vmatmul.mubr.f32.gmra.mrb[0].mxu0 %v352
      %v491 = vpop.f32.mrb[0].mxu0
      %v492 = vadd.f32 %v235, %v491
      %v493 = vpop.f32.mrb[0].mxu0
      %494 = vmatprep.mubr.f32.mxu0 0.0
      %495 = vmatmul.mubr.f32.gmra.mrb[0].mxu0 %v355
      %v496 = vpop.f32.mrb[0].mxu0
      %v497 = vadd.f32 %v240, %v496
      %v498 = vpop.f32.mrb[0].mxu0
      %499 = vmatprep.mubr.f32.mxu0 0.0
      %500 = vmatmul.mubr.f32.gmra.mrb[0].mxu0 %v358
      %v501 = vpop.f32.mrb[0].mxu0
      %v502 = vadd.f32 %v245, %v501
      %v503 = vpop.f32.mrb[0].mxu0
      %504 = vmatprep.mubr.f32.mxu0 0.0
      %505 = vmatmul.mubr.f32.gmra.mrb[0].mxu0 %v361
      %v506 = vpop.f32.mrb[0].mxu0
      %v507 = vadd.f32 %v250, %v506
      %v508 = vpop.f32.mrb[0].mxu0
      %509 = vmatprep.mubr.f32.mxu0 0.0
      %510 = vmatmul.mubr.f32.gmra.mrb[0].mxu0 %v364
      %v511 = vpop.f32.mrb[0].mxu0
      %v512 = vadd.f32 %v255, %v511
      %v513 = vpop.f32.mrb[0].mxu0
      %514 = vmatprep.mubr.f32.mxu0 0.0
      %515 = vmatmul.mubr.f32.gmra.mrb[0].mxu0 %v367
      %v516 = vpop.f32.mrb[0].mxu0
      %v517 = vadd.f32 %v260, %v516
      %v518 = vpop.f32.mrb[0].mxu0
      %519 = vmatprep.mubr.f32.mxu0 0.0
      %520 = vmatmul.mubr.f32.gmra.mrb[0].mxu0 %v370
      %v521 = vpop.f32.mrb[0].mxu0
      %v522 = vadd.f32 %v265, %v521
      %v523 = vpop.f32.mrb[0].mxu0
      %524 = vmatprep.mubr.f32.mxu0 0.0
      %525 = vmatmul.mubr.f32.gmra.mrb[0].mxu0 %v373
      %v526 = vpop.f32.mrb[0].mxu0
      %v527 = vadd.f32 %v270, %v526
      %v528 = vpop.f32.mrb[0].mxu0
      %529 = vmatprep.mubr.f32.mxu0 0.0
      %530 = vmatmul.mubr.f32.gmra.mrb[0].mxu0 %v376
      %v531 = vpop.f32.mrb[0].mxu0
      %v532 = vadd.f32 %v275, %v531
      %v533 = vpop.f32.mrb[0].mxu0
      %534 = vmatprep.mubr.f32.mxu0 0.0
      %535 = vmatmul.mubr.f32.gmra.mrb[0].mxu0 %v379
      %v536 = vpop.f32.mrb[0].mxu0
      %v537 = vadd.f32 %v280, %v536
      %v538 = vpop.f32.mrb[0].mxu0
      %539 = vmatprep.mubr.f32.mxu0 0.0
      %540 = vmatmul.mubr.f32.gmra.mrb[0].mxu0 %v382
      %v541 = vpop.f32.mrb[0].mxu0
      %v542 = vadd.f32 %v285, %v541
      %v543 = vpop.f32.mrb[0].mxu0
      %544 = vmatprep.mubr.f32.mxu0 0.0
      %545 = vmatmul.mubr.f32.gmra.mrb[0].mxu0 %v385
      %v546 = vpop.f32.mrb[0].mxu0
      %v547 = vadd.f32 %v290, %v546
      %v548 = vpop.f32.mrb[0].mxu0
      %549 = vmatprep.mubr.f32.mxu0 0.0
      %550 = vmatmul.mubr.f32.gmra.mrb[0].mxu0 %v388
      %v551 = vpop.f32.mrb[0].mxu0
      %v552 = vadd.f32 %v295, %v551
      %v553 = vpop.f32.mrb[0].mxu0
      %554 = vmatprep.mubr.f32.mxu0 0.0
      %555 = vmatmul.mubr.f32.gmra.mrb[0].mxu0 %v391
      %v556 = vpop.f32.mrb[0].mxu0
      %v557 = vadd.f32 %v300, %v556
      %v558 = vpop.f32.mrb[0].mxu0
      %559 = vmatprep.mubr.f32.mxu0 0.0
      %560 = vmatmul.mubr.f32.gmra.mrb[0].mxu0 %v394
      %v561 = vpop.f32.mrb[0].mxu0
      %v562 = vadd.f32 %v305, %v561
      %v563 = vpop.f32.mrb[0].mxu0
      %564 = vmatprep.mubr.f32.mxu0 0.0
      %565 = vmatmul.mubr.f32.gmra.mrb[0].mxu0 %v397
      %v566 = vpop.f32.mrb[0].mxu0
      %v567 = vadd.f32 %v310, %v566
      %v568 = vpop.f32.mrb[0].mxu0
      %569 = vmatprep.mubr.f32.mxu0 0.0
      %570 = vmatmul.mubr.f32.gmra.mrb[0].mxu0 %v400
      %v571 = vpop.f32.mrb[0].mxu0
      %v572 = vadd.f32 %v315, %v571
      %v573 = vpop.f32.mrb[0].mxu0
      %574 = vmatprep.mubr.f32.mxu0 0.0
      %575 = vmatmul.mubr.f32.gmra.mrb[0].mxu0 %v403
      %v576 = vpop.f32.mrb[0].mxu0
      %v577 = vadd.f32 %v320, %v576
      %v578 = vpop.f32.mrb[0].mxu0
      %579 = vmatprep.mubr.f32.mxu0 0.0
      %580 = vmatmul.mubr.f32.gmra.mrb[0].mxu0 %v406
      %v581 = vpop.f32.mrb[0].mxu0
      %v582 = vadd.f32 %v325, %v581
      %v583 = vpop.f32.mrb[0].mxu0
      %584 = vmatprep.mubr.f32.mxu0 0.0
      %585 = vmatmul.mubr.f32.gmra.mrb[0].mxu0 %v409
      %v586 = vpop.f32.mrb[0].mxu0
      %v587 = vadd.f32 %v330, %v586
      %v588 = vpop.f32.mrb[0].mxu0
      %589 = vmatprep.mubr.f32.mxu0 0.0
      %590 = vmatmul.mubr.f32.gmra.mrb[0].mxu0 %v412
      %v591 = vpop.f32.mrb[0].mxu0
      %v592 = vadd.f32 %v335, %v591
      %v593 = vpop.f32.mrb[0].mxu0
      %594 = vmatprep.mubr.f32.mxu0 0.0
      %595 = vmatmul.mubr.f32.gmra.mrb[0].mxu0 %v415
      %v596 = vpop.f32.mrb[0].mxu0
      %v597 = vadd.f32 %v340, %v596
      %v598 = vpop.f32.mrb[0].mxu0
      %599 = vmatprep.mubr.f32.mxu0 0.0
      %600 = vmatmul.mubr.f32.gmra.mrb[0].mxu0 %v418
      %v601 = vpop.f32.mrb[0].mxu0
      %v602 = vadd.f32 %v345, %v601
      %v603 = vpop.f32.mrb[0].mxu0
      %604 = vdwg.mxu0
      %605 = vxpose.xlu0.b32.start [1/16] %v487, 128
      %606 = vxpose.xlu0.b32.cont [2/16] %v492, 128
      %607 = vxpose.xlu0.b32.cont [3/16] %v497, 128
      %608 = vxpose.xlu0.b32.cont [4/16] %v502, 128
      %609 = vxpose.xlu0.b32.cont [5/16] %v507, 128
      %610 = vxpose.xlu0.b32.cont [6/16] %v512, 128
      %611 = vxpose.xlu0.b32.cont [7/16] %v517, 128
      %612 = vxpose.xlu0.b32.cont [8/16] %v522, 128
      %613 = vxpose.xlu0.b32.cont [9/16] 0.0, 128
      %614 = vxpose.xlu0.b32.cont [10/16] 0.0, 128
      %615 = vxpose.xlu0.b32.cont [11/16] 0.0, 128
      %616 = vxpose.xlu0.b32.cont [12/16] 0.0, 128
      %617 = vxpose.xlu0.b32.cont [13/16] 0.0, 128
      %618 = vxpose.xlu0.b32.cont [14/16] 0.0, 128
      %619 = vxpose.xlu0.b32.cont [15/16] 0.0, 128
      %620 = vxpose.xlu0.b32.end [16/16] 0.0, 128
      %v621 = vpop.trf.xlu0
      %v622 = vpop.trf.xlu0
      %v623 = vpop.trf.xlu0
      %v624 = vpop.trf.xlu0
      %v625 = vpop.trf.xlu0
      %v626 = vpop.trf.xlu0
      %v627 = vpop.trf.xlu0
      %v628 = vpop.trf.xlu0
      %v629 = vpop.trf.xlu0
      %v630 = vpop.trf.xlu0
      %v631 = vpop.trf.xlu0
      %v632 = vpop.trf.xlu0
      %v633 = vpop.trf.xlu0
      %v634 = vpop.trf.xlu0
      %v635 = vpop.trf.xlu0
      %v636 = vpop.trf.xlu0
      %vm637 = vcmask 64512
      %v639 = vsel %vm637, %v621, 0
      %v642 = vsel %vm637, %v622, 0
      %644 = vmatprep.subr.mxu0 0.0
      %645 = vmatpush1.msra.mxu0 %v527
      %646 = vmatprep.subr.mxu0 0.0
      %647 = vmatpush1.msra.mxu0 0.0
      %648 = vmatprep.subr.mxu0 0.0
      %649 = vmatpush1.msra.mxu0 0.0
      %650 = vmatprep.subr.mxu0 0.0
      %651 = vmatpush1.msra.mxu0 0.0
      %652 = vmatprep.subr.mxu0 0.0
      %653 = vmatpush1.msra.mxu0 0.0
      %654 = vmatprep.subr.mxu0 0.0
      %655 = vmatpush1.msra.mxu0 0.0
      %656 = vmatprep.subr.mxu0 0.0
      %657 = vmatpush1.msra.mxu0 0.0
      %658 = vmatprep.subr.mxu0 0.0
      %659 = vmatpush1.msra.mxu0 0.0
      %660 = vmatprep.subr.mxu0 0.0
      %661 = vmatpush1.msra.mxu0 0.0
      %662 = vmatprep.subr.mxu0 0.0
      %663 = vmatpush1.msra.mxu0 0.0
      %664 = vmatprep.subr.mxu0 0.0
      %665 = vmatpush1.msra.mxu0 0.0
      %666 = vmatprep.subr.mxu0 0.0
      %667 = vmatpush1.msra.mxu0 0.0
      %668 = vmatprep.subr.mxu0 0.0
      %669 = vmatpush1.msra.mxu0 0.0
      %670 = vmatprep.subr.mxu0 0.0
      %671 = vmatpush1.msra.mxu0 0.0
      %672 = vmatprep.subr.mxu0 0.0
      %673 = vmatpush1.msra.mxu0 0.0
      %674 = vmatprep.subr.mxu0 0.0
      %675 = vmatpush1.msra.mxu0 0.0
      %676 = vmatprep.subr.mxu0 0.0
      %677 = vmatpush1.msra.mxu0 0.0
      %678 = vmatprep.subr.mxu0 0.0
      %679 = vmatpush1.msra.mxu0 0.0
      %680 = vmatprep.subr.mxu0 0.0
      %681 = vmatpush1.msra.mxu0 0.0
      %682 = vmatprep.subr.mxu0 0.0
      %683 = vmatpush1.msra.mxu0 0.0
      %684 = vmatprep.subr.mxu0 0.0
      %685 = vmatpush1.msra.mxu0 0.0
      %686 = vmatprep.subr.mxu0 0.0
      %687 = vmatpush1.msra.mxu0 0.0
      %688 = vmatprep.subr.mxu0 0.0
      %689 = vmatpush1.msra.mxu0 0.0
      %690 = vmatprep.subr.mxu0 0.0
      %691 = vmatpush1.msra.mxu0 0.0
      %692 = vmatprep.subr.mxu0 0.0
      %693 = vmatpush1.msra.mxu0 0.0
      %694 = vmatprep.subr.mxu0 0.0
      %695 = vmatpush1.msra.mxu0 0.0
      %696 = vmatprep.subr.mxu0 0.0
      %697 = vmatpush1.msra.mxu0 0.0
      %698 = vmatprep.subr.mxu0 0.0
      %699 = vmatpush1.msra.mxu0 0.0
      %700 = vmatprep.subr.mxu0 0.0
      %701 = vmatpush1.msra.mxu0 0.0
      %702 = vmatprep.subr.mxu0 0.0
      %703 = vmatpush1.msra.mxu0 0.0
      %704 = vmatprep.subr.mxu0 0.0
      %705 = vmatpush1.msra.mxu0 0.0
      %706 = vmatprep.subr.mxu0 0.0
      %707 = vmatpush1.msra.mxu0 0.0
      %708 = vmatprep.mubr.f32.mxu0 0.0
      %709 = vmatmul.mubr.f32.gmra.mrb[0].mxu0 %v639
      %v710 = vpop.f32.mrb[0].mxu0
      %v711 = vadd.f32 0.0, %v710
      %v712 = vpop.f32.mrb[0].mxu0
      %713 = vmatprep.mubr.f32.mxu0 0.0
      %714 = vmatmul.mubr.f32.gmra.mrb[0].mxu0 %v642
      %v715 = vpop.f32.mrb[0].mxu0
      %v716 = vadd.f32 0.0, %v715
      %v717 = vpop.f32.mrb[0].mxu0
      %718 = vdwg.mxu0
      %vm719 = vcmask 130048
      %v720 = vsel %vm719, %v711, -inf
      %721 = vmax.xlane.f32.xlu0 %v720
      %v722 = vpop.xlane.xlu0 %721
      %v723 = vsel %vm719, %v716, -inf
      %724 = vmax.xlane.f32.xlu0 %v723
      %v725 = vpop.xlane.xlu0 %724
      %v726 = vsub.f32 %v711, %v722
      %v727 = vsub.f32 %v716, %v725
      %v728 = vmul.f32 %v726, 1.442695
      %v729 = vpow.pop %v728
      %v730 = vmul.f32 %v727, 1.442695
      %v731 = vpow.pop %v730
      %v732 = vsel %vm719, %v729, 0.0
      %733 = vadd.xlane.f32.xlu0 %v732
      %v734 = vpop.xlane.xlu0 %733
      %v735 = vsel %vm719, %v731, 0.0
      %736 = vadd.xlane.f32.xlu0 %v735
      %v737 = vpop.xlane.xlu0 %736
      %v738 = vrcp.pop %v734
      %v739 = vrcp.pop %v737
      %v740 = vmul.f32 %v729, %v738
      %v741 = vmul.f32 %v731, %v739
      %v743 = vsel %vm719, %v567, 0
      %745 = vmatprep.subr.mxu0 0.0
      %746 = vmatpush1.msra.mxu0 %v740
      %747 = vmatprep.subr.mxu0 0.0
      %748 = vmatpush1.msra.mxu0 %v741
      %749 = vmatprep.subr.mxu0 0.0
      %750 = vmatpush1.msra.mxu0 0.0
      %751 = vmatprep.subr.mxu0 0.0
      %752 = vmatpush1.msra.mxu0 0.0
      %753 = vmatprep.subr.mxu0 0.0
      %754 = vmatpush1.msra.mxu0 0.0
      %755 = vmatprep.subr.mxu0 0.0
      %756 = vmatpush1.msra.mxu0 0.0
      %757 = vmatprep.subr.mxu0 0.0
      %758 = vmatpush1.msra.mxu0 0.0
      %759 = vmatprep.subr.mxu0 0.0
      %760 = vmatpush1.msra.mxu0 0.0
      %761 = vmatprep.subr.mxu0 0.0
      %762 = vmatpush1.msra.mxu0 0.0
      %763 = vmatprep.subr.mxu0 0.0
      %764 = vmatpush1.msra.mxu0 0.0
      %765 = vmatprep.subr.mxu0 0.0
      %766 = vmatpush1.msra.mxu0 0.0
      %767 = vmatprep.subr.mxu0 0.0
      %768 = vmatpush1.msra.mxu0 0.0
      %769 = vmatprep.subr.mxu0 0.0
      %770 = vmatpush1.msra.mxu0 0.0
      %771 = vmatprep.subr.mxu0 0.0
      %772 = vmatpush1.msra.mxu0 0.0
      %773 = vmatprep.subr.mxu0 0.0
      %774 = vmatpush1.msra.mxu0 0.0
      %775 = vmatprep.subr.mxu0 0.0
      %776 = vmatpush1.msra.mxu0 0.0
      %777 = vmatprep.subr.mxu0 0.0
      %778 = vmatpush1.msra.mxu0 0.0
      %779 = vmatprep.subr.mxu0 0.0
      %780 = vmatpush1.msra.mxu0 0.0
      %781 = vmatprep.subr.mxu0 0.0
      %782 = vmatpush1.msra.mxu0 0.0
      %783 = vmatprep.subr.mxu0 0.0
      %784 = vmatpush1.msra.mxu0 0.0
      %785 = vmatprep.subr.mxu0 0.0
      %786 = vmatpush1.msra.mxu0 0.0
      %787 = vmatprep.subr.mxu0 0.0
      %788 = vmatpush1.msra.mxu0 0.0
      %789 = vmatprep.subr.mxu0 0.0
      %790 = vmatpush1.msra.mxu0 0.0
      %791 = vmatprep.subr.mxu0 0.0
      %792 = vmatpush1.msra.mxu0 0.0
      %793 = vmatprep.subr.mxu0 0.0
      %794 = vmatpush1.msra.mxu0 0.0
      %795 = vmatprep.subr.mxu0 0.0
      %796 = vmatpush1.msra.mxu0 0.0
      %797 = vmatprep.subr.mxu0 0.0
      %798 = vmatpush1.msra.mxu0 0.0
      %799 = vmatprep.subr.mxu0 0.0
      %800 = vmatpush1.msra.mxu0 0.0
      %801 = vmatprep.subr.mxu0 0.0
      %802 = vmatpush1.msra.mxu0 0.0
      %803 = vmatprep.subr.mxu0 0.0
      %804 = vmatpush1.msra.mxu0 0.0
      %805 = vmatprep.subr.mxu0 0.0
      %806 = vmatpush1.msra.mxu0 0.0
      %807 = vmatprep.subr.mxu0 0.0
      %808 = vmatpush1.msra.mxu0 0.0
      %809 = vmatprep.mubr.f32.mxu0 0.0
      %810 = vmatmul.mubr.f32.gmra.mrb[0].mxu0 %v743
      %v811 = vpop.f32.mrb[0].mxu0
      %v812 = vadd.f32 0.0, %v811
      %v813 = vpop.f32.mrb[0].mxu0
      %814 = vdwg.mxu0
      %815 = vrot.lane.b32.xlu0 %v621, 120
      %v816 = vpop.permute.xlu0 %815
      %817 = vrot.lane.b32.xlu0 %v622, 120
      %v818 = vpop.permute.xlu0 %817
      %v819 = vsel %vm637, %v816, 0
      %v821 = vsel %vm637, %v818, 0
      %823 = vmatprep.subr.mxu0 0.0
      %824 = vmatpush1.msra.mxu0 %v532
      %825 = vmatprep.subr.mxu0 0.0
      %826 = vmatpush1.msra.mxu0 0.0
      %827 = vmatprep.subr.mxu0 0.0
      %828 = vmatpush1.msra.mxu0 0.0
      %829 = vmatprep.subr.mxu0 0.0
      %830 = vmatpush1.msra.mxu0 0.0
      %831 = vmatprep.subr.mxu0 0.0
      %832 = vmatpush1.msra.mxu0 0.0
      %833 = vmatprep.subr.mxu0 0.0
      %834 = vmatpush1.msra.mxu0 0.0
      %835 = vmatprep.subr.mxu0 0.0
      %836 = vmatpush1.msra.mxu0 0.0
      %837 = vmatprep.subr.mxu0 0.0
      %838 = vmatpush1.msra.mxu0 0.0
      %839 = vmatprep.subr.mxu0 0.0
      %840 = vmatpush1.msra.mxu0 0.0
      %841 = vmatprep.subr.mxu0 0.0
      %842 = vmatpush1.msra.mxu0 0.0
      %843 = vmatprep.subr.mxu0 0.0
      %844 = vmatpush1.msra.mxu0 0.0
      %845 = vmatprep.subr.mxu0 0.0
      %846 = vmatpush1.msra.mxu0 0.0
      %847 = vmatprep.subr.mxu0 0.0
      %848 = vmatpush1.msra.mxu0 0.0
      %849 = vmatprep.subr.mxu0 0.0
      %850 = vmatpush1.msra.mxu0 0.0
      %851 = vmatprep.subr.mxu0 0.0
      %852 = vmatpush1.msra.mxu0 0.0
      %853 = vmatprep.subr.mxu0 0.0
      %854 = vmatpush1.msra.mxu0 0.0
      %855 = vmatprep.subr.mxu0 0.0
      %856 = vmatpush1.msra.mxu0 0.0
      %857 = vmatprep.subr.mxu0 0.0
      %858 = vmatpush1.msra.mxu0 0.0
      %859 = vmatprep.subr.mxu0 0.0
      %860 = vmatpush1.msra.mxu0 0.0
      %861 = vmatprep.subr.mxu0 0.0
      %862 = vmatpush1.msra.mxu0 0.0
      %863 = vmatprep.subr.mxu0 0.0
      %864 = vmatpush1.msra.mxu0 0.0
      %865 = vmatprep.subr.mxu0 0.0
      %866 = vmatpush1.msra.mxu0 0.0
      %867 = vmatprep.subr.mxu0 0.0
      %868 = vmatpush1.msra.mxu0 0.0
      %869 = vmatprep.subr.mxu0 0.0
      %870 = vmatpush1.msra.mxu0 0.0
      %871 = vmatprep.subr.mxu0 0.0
      %872 = vmatpush1.msra.mxu0 0.0
      %873 = vmatprep.subr.mxu0 0.0
      %874 = vmatpush1.msra.mxu0 0.0
      %875 = vmatprep.subr.mxu0 0.0
      %876 = vmatpush1.msra.mxu0 0.0
      %877 = vmatprep.subr.mxu0 0.0
      %878 = vmatpush1.msra.mxu0 0.0
      %879 = vmatprep.subr.mxu0 0.0
      %880 = vmatpush1.msra.mxu0 0.0
      %881 = vmatprep.subr.mxu0 0.0
      %882 = vmatpush1.msra.mxu0 0.0
      %883 = vmatprep.subr.mxu0 0.0
      %884 = vmatpush1.msra.mxu0 0.0
      %885 = vmatprep.subr.mxu0 0.0
      %886 = vmatpush1.msra.mxu0 0.0
      %887 = vmatprep.mubr.f32.mxu0 0.0
      %888 = vmatmul.mubr.f32.gmra.mrb[0].mxu0 %v819
      %v889 = vpop.f32.mrb[0].mxu0
      %v890 = vadd.f32 0.0, %v889
      %v891 = vpop.f32.mrb[0].mxu0
      %892 = vmatprep.mubr.f32.mxu0 0.0
      %893 = vmatmul.mubr.f32.gmra.mrb[0].mxu0 %v821
      %v894 = vpop.f32.mrb[0].mxu0
      %v895 = vadd.f32 0.0, %v894
      %v896 = vpop.f32.mrb[0].mxu0
      %897 = vdwg.mxu0
      %v898 = vsel %vm719, %v890, -inf
      %899 = vmax.xlane.f32.xlu0 %v898
      %v900 = vpop.xlane.xlu0 %899
      %v901 = vsel %vm719, %v895, -inf
      %902 = vmax.xlane.f32.xlu0 %v901
      %v903 = vpop.xlane.xlu0 %902
      %v904 = vsub.f32 %v890, %v900
      %v905 = vsub.f32 %v895, %v903
      %v906 = vmul.f32 %v904, 1.442695
      %v907 = vpow.pop %v906
      %v908 = vmul.f32 %v905, 1.442695
      %v909 = vpow.pop %v908
      %v910 = vsel %vm719, %v907, 0.0
      %911 = vadd.xlane.f32.xlu0 %v910
      %v912 = vpop.xlane.xlu0 %911
      %v913 = vsel %vm719, %v909, 0.0
      %914 = vadd.xlane.f32.xlu0 %v913
      %v915 = vpop.xlane.xlu0 %914
      %v916 = vrcp.pop %v912
      %v917 = vrcp.pop %v915
      %v918 = vmul.f32 %v907, %v916
      %v919 = vmul.f32 %v909, %v917
      %v921 = vsel %vm719, %v572, 0
      %923 = vmatprep.subr.mxu0 0.0
      %924 = vmatpush1.msra.mxu0 %v918
      %925 = vmatprep.subr.mxu0 0.0
      %926 = vmatpush1.msra.mxu0 %v919
      %927 = vmatprep.subr.mxu0 0.0
      %928 = vmatpush1.msra.mxu0 0.0
      %929 = vmatprep.subr.mxu0 0.0
      %930 = vmatpush1.msra.mxu0 0.0
      %931 = vmatprep.subr.mxu0 0.0
      %932 = vmatpush1.msra.mxu0 0.0
      %933 = vmatprep.subr.mxu0 0.0
      %934 = vmatpush1.msra.mxu0 0.0
      %935 = vmatprep.subr.mxu0 0.0
      %936 = vmatpush1.msra.mxu0 0.0
      %937 = vmatprep.subr.mxu0 0.0
      %938 = vmatpush1.msra.mxu0 0.0
      %939 = vmatprep.subr.mxu0 0.0
      %940 = vmatpush1.msra.mxu0 0.0
      %941 = vmatprep.subr.mxu0 0.0
      %942 = vmatpush1.msra.mxu0 0.0
      %943 = vmatprep.subr.mxu0 0.0
      %944 = vmatpush1.msra.mxu0 0.0
      %945 = vmatprep.subr.mxu0 0.0
      %946 = vmatpush1.msra.mxu0 0.0
      %947 = vmatprep.subr.mxu0 0.0
      %948 = vmatpush1.msra.mxu0 0.0
      %949 = vmatprep.subr.mxu0 0.0
      %950 = vmatpush1.msra.mxu0 0.0
      %951 = vmatprep.subr.mxu0 0.0
      %952 = vmatpush1.msra.mxu0 0.0
      %953 = vmatprep.subr.mxu0 0.0
      %954 = vmatpush1.msra.mxu0 0.0
      %955 = vmatprep.subr.mxu0 0.0
      %956 = vmatpush1.msra.mxu0 0.0
      %957 = vmatprep.subr.mxu0 0.0
      %958 = vmatpush1.msra.mxu0 0.0
      %959 = vmatprep.subr.mxu0 0.0
      %960 = vmatpush1.msra.mxu0 0.0
      %961 = vmatprep.subr.mxu0 0.0
      %962 = vmatpush1.msra.mxu0 0.0
      %963 = vmatprep.subr.mxu0 0.0
      %964 = vmatpush1.msra.mxu0 0.0
      %965 = vmatprep.subr.mxu0 0.0
      %966 = vmatpush1.msra.mxu0 0.0
      %967 = vmatprep.subr.mxu0 0.0
      %968 = vmatpush1.msra.mxu0 0.0
      %969 = vmatprep.subr.mxu0 0.0
      %970 = vmatpush1.msra.mxu0 0.0
      %971 = vmatprep.subr.mxu0 0.0
      %972 = vmatpush1.msra.mxu0 0.0
      %973 = vmatprep.subr.mxu0 0.0
      %974 = vmatpush1.msra.mxu0 0.0
      %975 = vmatprep.subr.mxu0 0.0
      %976 = vmatpush1.msra.mxu0 0.0
      %977 = vmatprep.subr.mxu0 0.0
      %978 = vmatpush1.msra.mxu0 0.0
      %979 = vmatprep.subr.mxu0 0.0
      %980 = vmatpush1.msra.mxu0 0.0
      %981 = vmatprep.subr.mxu0 0.0
      %982 = vmatpush1.msra.mxu0 0.0
      %983 = vmatprep.subr.mxu0 0.0
      %984 = vmatpush1.msra.mxu0 0.0
      %985 = vmatprep.subr.mxu0 0.0
      %986 = vmatpush1.msra.mxu0 0.0
      %987 = vmatprep.mubr.f32.mxu0 0.0
      %988 = vmatmul.mubr.f32.gmra.mrb[0].mxu0 %v921
      %v989 = vpop.f32.mrb[0].mxu0
      %v990 = vadd.f32 0.0, %v989
      %v991 = vpop.f32.mrb[0].mxu0
      %992 = vdwg.mxu0
      %993 = vrot.lane.b32.xlu0 %v621, 112
      %v994 = vpop.permute.xlu0 %993
      %995 = vrot.lane.b32.xlu0 %v622, 112
      %v996 = vpop.permute.xlu0 %995
      %v997 = vsel %vm637, %v994, 0
      %v999 = vsel %vm637, %v996, 0
      %1001 = vmatprep.subr.mxu0 0.0
      %1002 = vmatpush1.msra.mxu0 %v537
      %1003 = vmatprep.subr.mxu0 0.0
      %1004 = vmatpush1.msra.mxu0 0.0
      %1005 = vmatprep.subr.mxu0 0.0
      %1006 = vmatpush1.msra.mxu0 0.0
      %1007 = vmatprep.subr.mxu0 0.0
      %1008 = vmatpush1.msra.mxu0 0.0
      %1009 = vmatprep.subr.mxu0 0.0
      %1010 = vmatpush1.msra.mxu0 0.0
      %1011 = vmatprep.subr.mxu0 0.0
      %1012 = vmatpush1.msra.mxu0 0.0
      %1013 = vmatprep.subr.mxu0 0.0
      %1014 = vmatpush1.msra.mxu0 0.0
      %1015 = vmatprep.subr.mxu0 0.0
      %1016 = vmatpush1.msra.mxu0 0.0
      %1017 = vmatprep.subr.mxu0 0.0
      %1018 = vmatpush1.msra.mxu0 0.0
      %1019 = vmatprep.subr.mxu0 0.0
      %1020 = vmatpush1.msra.mxu0 0.0
      %1021 = vmatprep.subr.mxu0 0.0
      %1022 = vmatpush1.msra.mxu0 0.0
      %1023 = vmatprep.subr.mxu0 0.0
      %1024 = vmatpush1.msra.mxu0 0.0
      %1025 = vmatprep.subr.mxu0 0.0
      %1026 = vmatpush1.msra.mxu0 0.0
      %1027 = vmatprep.subr.mxu0 0.0
      %1028 = vmatpush1.msra.mxu0 0.0
      %1029 = vmatprep.subr.mxu0 0.0
      %1030 = vmatpush1.msra.mxu0 0.0
      %1031 = vmatprep.subr.mxu0 0.0
      %1032 = vmatpush1.msra.mxu0 0.0
      %1033 = vmatprep.subr.mxu0 0.0
      %1034 = vmatpush1.msra.mxu0 0.0
      %1035 = vmatprep.subr.mxu0 0.0
      %1036 = vmatpush1.msra.mxu0 0.0
      %1037 = vmatprep.subr.mxu0 0.0
      %1038 = vmatpush1.msra.mxu0 0.0
      %1039 = vmatprep.subr.mxu0 0.0
      %1040 = vmatpush1.msra.mxu0 0.0
      %1041 = vmatprep.subr.mxu0 0.0
      %1042 = vmatpush1.msra.mxu0 0.0
      %1043 = vmatprep.subr.mxu0 0.0
      %1044 = vmatpush1.msra.mxu0 0.0
      %1045 = vmatprep.subr.mxu0 0.0
      %1046 = vmatpush1.msra.mxu0 0.0
      %1047 = vmatprep.subr.mxu0 0.0
      %1048 = vmatpush1.msra.mxu0 0.0
      %1049 = vmatprep.subr.mxu0 0.0
      %1050 = vmatpush1.msra.mxu0 0.0
      %1051 = vmatprep.subr.mxu0 0.0
      %1052 = vmatpush1.msra.mxu0 0.0
      %1053 = vmatprep.subr.mxu0 0.0
      %1054 = vmatpush1.msra.mxu0 0.0
      %1055 = vmatprep.subr.mxu0 0.0
      %1056 = vmatpush1.msra.mxu0 0.0
      %1057 = vmatprep.subr.mxu0 0.0
      %1058 = vmatpush1.msra.mxu0 0.0
      %1059 = vmatprep.subr.mxu0 0.0
      %1060 = vmatpush1.msra.mxu0 0.0
      %1061 = vmatprep.subr.mxu0 0.0
      %1062 = vmatpush1.msra.mxu0 0.0
      %1063 = vmatprep.subr.mxu0 0.0
      %1064 = vmatpush1.msra.mxu0 0.0
      %1065 = vmatprep.mubr.f32.mxu0 0.0
      %1066 = vmatmul.mubr.f32.gmra.mrb[0].mxu0 %v997
      %v1067 = vpop.f32.mrb[0].mxu0
      %v1068 = vadd.f32 0.0, %v1067
      %v1069 = vpop.f32.mrb[0].mxu0
      %1070 = vmatprep.mubr.f32.mxu0 0.0
      %1071 = vmatmul.mubr.f32.gmra.mrb[0].mxu0 %v999
      %v1072 = vpop.f32.mrb[0].mxu0
      %v1073 = vadd.f32 0.0, %v1072
      %v1074 = vpop.f32.mrb[0].mxu0
      %1075 = vdwg.mxu0
      %v1076 = vsel %vm719, %v1068, -inf
      %1077 = vmax.xlane.f32.xlu0 %v1076
      %v1078 = vpop.xlane.xlu0 %1077
      %v1079 = vsel %vm719, %v1073, -inf
      %1080 = vmax.xlane.f32.xlu0 %v1079
      %v1081 = vpop.xlane.xlu0 %1080
      %v1082 = vsub.f32 %v1068, %v1078
      %v1083 = vsub.f32 %v1073, %v1081
      %v1084 = vmul.f32 %v1082, 1.442695
      %v1085 = vpow.pop %v1084
      %v1086 = vmul.f32 %v1083, 1.442695
      %v1087 = vpow.pop %v1086
      %v1088 = vsel %vm719, %v1085, 0.0
      %1089 = vadd.xlane.f32.xlu0 %v1088
      %v1090 = vpop.xlane.xlu0 %1089
      %v1091 = vsel %vm719, %v1087, 0.0
      %1092 = vadd.xlane.f32.xlu0 %v1091
      %v1093 = vpop.xlane.xlu0 %1092
      %v1094 = vrcp.pop %v1090
      %v1095 = vrcp.pop %v1093
      %v1096 = vmul.f32 %v1085, %v1094
      %v1097 = vmul.f32 %v1087, %v1095
      %v1099 = vsel %vm719, %v577, 0
      %1101 = vmatprep.subr.mxu0 0.0
      %1102 = vmatpush1.msra.mxu0 %v1096
      %1103 = vmatprep.subr.mxu0 0.0
      %1104 = vmatpush1.msra.mxu0 %v1097
      %1105 = vmatprep.subr.mxu0 0.0
      %1106 = vmatpush1.msra.mxu0 0.0
      %1107 = vmatprep.subr.mxu0 0.0
      %1108 = vmatpush1.msra.mxu0 0.0
      %1109 = vmatprep.subr.mxu0 0.0
      %1110 = vmatpush1.msra.mxu0 0.0
      %1111 = vmatprep.subr.mxu0 0.0
      %1112 = vmatpush1.msra.mxu0 0.0
      %1113 = vmatprep.subr.mxu0 0.0
      %1114 = vmatpush1.msra.mxu0 0.0
      %1115 = vmatprep.subr.mxu0 0.0
      %1116 = vmatpush1.msra.mxu0 0.0
      %1117 = vmatprep.subr.mxu0 0.0
      %1118 = vmatpush1.msra.mxu0 0.0
      %1119 = vmatprep.subr.mxu0 0.0
      %1120 = vmatpush1.msra.mxu0 0.0
      %1121 = vmatprep.subr.mxu0 0.0
      %1122 = vmatpush1.msra.mxu0 0.0
      %1123 = vmatprep.subr.mxu0 0.0
      %1124 = vmatpush1.msra.mxu0 0.0
      %1125 = vmatprep.subr.mxu0 0.0
      %1126 = vmatpush1.msra.mxu0 0.0
      %1127 = vmatprep.subr.mxu0 0.0
      %1128 = vmatpush1.msra.mxu0 0.0
      %1129 = vmatprep.subr.mxu0 0.0
      %1130 = vmatpush1.msra.mxu0 0.0
      %1131 = vmatprep.subr.mxu0 0.0
      %1132 = vmatpush1.msra.mxu0 0.0
      %1133 = vmatprep.subr.mxu0 0.0
      %1134 = vmatpush1.msra.mxu0 0.0
      %1135 = vmatprep.subr.mxu0 0.0
      %1136 = vmatpush1.msra.mxu0 0.0
      %1137 = vmatprep.subr.mxu0 0.0
      %1138 = vmatpush1.msra.mxu0 0.0
      %1139 = vmatprep.subr.mxu0 0.0
      %1140 = vmatpush1.msra.mxu0 0.0
      %1141 = vmatprep.subr.mxu0 0.0
      %1142 = vmatpush1.msra.mxu0 0.0
      %1143 = vmatprep.subr.mxu0 0.0
      %1144 = vmatpush1.msra.mxu0 0.0
      %1145 = vmatprep.subr.mxu0 0.0
      %1146 = vmatpush1.msra.mxu0 0.0
      %1147 = vmatprep.subr.mxu0 0.0
      %1148 = vmatpush1.msra.mxu0 0.0
      %1149 = vmatprep.subr.mxu0 0.0
      %1150 = vmatpush1.msra.mxu0 0.0
      %1151 = vmatprep.subr.mxu0 0.0
      %1152 = vmatpush1.msra.mxu0 0.0
      %1153 = vmatprep.subr.mxu0 0.0
      %1154 = vmatpush1.msra.mxu0 0.0
      %1155 = vmatprep.subr.mxu0 0.0
      %1156 = vmatpush1.msra.mxu0 0.0
      %1157 = vmatprep.subr.mxu0 0.0
      %1158 = vmatpush1.msra.mxu0 0.0
      %1159 = vmatprep.subr.mxu0 0.0
      %1160 = vmatpush1.msra.mxu0 0.0
      %1161 = vmatprep.subr.mxu0 0.0
      %1162 = vmatpush1.msra.mxu0 0.0
      %1163 = vmatprep.subr.mxu0 0.0
      %1164 = vmatpush1.msra.mxu0 0.0
      %1165 = vmatprep.mubr.f32.mxu0 0.0
      %1166 = vmatmul.mubr.f32.gmra.mrb[0].mxu0 %v1099
      %v1167 = vpop.f32.mrb[0].mxu0
      %v1168 = vadd.f32 0.0, %v1167
      %v1169 = vpop.f32.mrb[0].mxu0
      %1170 = vdwg.mxu0
      %1171 = vrot.lane.b32.xlu0 %v621, 104
      %v1172 = vpop.permute.xlu0 %1171
      %1173 = vrot.lane.b32.xlu0 %v622, 104
      %v1174 = vpop.permute.xlu0 %1173
      %v1175 = vsel %vm637, %v1172, 0
      %v1177 = vsel %vm637, %v1174, 0
      %1179 = vmatprep.subr.mxu0 0.0
      %1180 = vmatpush1.msra.mxu0 %v542
      %1181 = vmatprep.subr.mxu0 0.0
      %1182 = vmatpush1.msra.mxu0 0.0
      %1183 = vmatprep.subr.mxu0 0.0
      %1184 = vmatpush1.msra.mxu0 0.0
      %1185 = vmatprep.subr.mxu0 0.0
      %1186 = vmatpush1.msra.mxu0 0.0
      %1187 = vmatprep.subr.mxu0 0.0
      %1188 = vmatpush1.msra.mxu0 0.0
      %1189 = vmatprep.subr.mxu0 0.0
      %1190 = vmatpush1.msra.mxu0 0.0
      %1191 = vmatprep.subr.mxu0 0.0
      %1192 = vmatpush1.msra.mxu0 0.0
      %1193 = vmatprep.subr.mxu0 0.0
      %1194 = vmatpush1.msra.mxu0 0.0
      %1195 = vmatprep.subr.mxu0 0.0
      %1196 = vmatpush1.msra.mxu0 0.0
      %1197 = vmatprep.subr.mxu0 0.0
      %1198 = vmatpush1.msra.mxu0 0.0
      %1199 = vmatprep.subr.mxu0 0.0
      %1200 = vmatpush1.msra.mxu0 0.0
      %1201 = vmatprep.subr.mxu0 0.0
      %1202 = vmatpush1.msra.mxu0 0.0
      %1203 = vmatprep.subr.mxu0 0.0
      %1204 = vmatpush1.msra.mxu0 0.0
      %1205 = vmatprep.subr.mxu0 0.0
      %1206 = vmatpush1.msra.mxu0 0.0
      %1207 = vmatprep.subr.mxu0 0.0
      %1208 = vmatpush1.msra.mxu0 0.0
      %1209 = vmatprep.subr.mxu0 0.0
      %1210 = vmatpush1.msra.mxu0 0.0
      %1211 = vmatprep.subr.mxu0 0.0
      %1212 = vmatpush1.msra.mxu0 0.0
      %1213 = vmatprep.subr.mxu0 0.0
      %1214 = vmatpush1.msra.mxu0 0.0
      %1215 = vmatprep.subr.mxu0 0.0
      %1216 = vmatpush1.msra.mxu0 0.0
      %1217 = vmatprep.subr.mxu0 0.0
      %1218 = vmatpush1.msra.mxu0 0.0
      %1219 = vmatprep.subr.mxu0 0.0
      %1220 = vmatpush1.msra.mxu0 0.0
      %1221 = vmatprep.subr.mxu0 0.0
      %1222 = vmatpush1.msra.mxu0 0.0
      %1223 = vmatprep.subr.mxu0 0.0
      %1224 = vmatpush1.msra.mxu0 0.0
      %1225 = vmatprep.subr.mxu0 0.0
      %1226 = vmatpush1.msra.mxu0 0.0
      %1227 = vmatprep.subr.mxu0 0.0
      %1228 = vmatpush1.msra.mxu0 0.0
      %1229 = vmatprep.subr.mxu0 0.0
      %1230 = vmatpush1.msra.mxu0 0.0
      %1231 = vmatprep.subr.mxu0 0.0
      %1232 = vmatpush1.msra.mxu0 0.0
      %1233 = vmatprep.subr.mxu0 0.0
      %1234 = vmatpush1.msra.mxu0 0.0
      %1235 = vmatprep.subr.mxu0 0.0
      %1236 = vmatpush1.msra.mxu0 0.0
      %1237 = vmatprep.subr.mxu0 0.0
      %1238 = vmatpush1.msra.mxu0 0.0
      %1239 = vmatprep.subr.mxu0 0.0
      %1240 = vmatpush1.msra.mxu0 0.0
      %1241 = vmatprep.subr.mxu0 0.0
      %1242 = vmatpush1.msra.mxu0 0.0
      %1243 = vmatprep.mubr.f32.mxu0 0.0
      %1244 = vmatmul.mubr.f32.gmra.mrb[0].mxu0 %v1175
      %v1245 = vpop.f32.mrb[0].mxu0
      %v1246 = vadd.f32 0.0, %v1245
      %v1247 = vpop.f32.mrb[0].mxu0
      %1248 = vmatprep.mubr.f32.mxu0 0.0
      %1249 = vmatmul.mubr.f32.gmra.mrb[0].mxu0 %v1177
      %v1250 = vpop.f32.mrb[0].mxu0
      %v1251 = vadd.f32 0.0, %v1250
      %v1252 = vpop.f32.mrb[0].mxu0
      %1253 = vdwg.mxu0
      %v1254 = vsel %vm719, %v1246, -inf
      %1255 = vmax.xlane.f32.xlu0 %v1254
      %v1256 = vpop.xlane.xlu0 %1255
      %v1257 = vsel %vm719, %v1251, -inf
      %1258 = vmax.xlane.f32.xlu0 %v1257
      %v1259 = vpop.xlane.xlu0 %1258
      %v1260 = vsub.f32 %v1246, %v1256
      %v1261 = vsub.f32 %v1251, %v1259
      %v1262 = vmul.f32 %v1260, 1.442695
      %v1263 = vpow.pop %v1262
      %v1264 = vmul.f32 %v1261, 1.442695
      %v1265 = vpow.pop %v1264
      %v1266 = vsel %vm719, %v1263, 0.0
      %1267 = vadd.xlane.f32.xlu0 %v1266
      %v1268 = vpop.xlane.xlu0 %1267
      %v1269 = vsel %vm719, %v1265, 0.0
      %1270 = vadd.xlane.f32.xlu0 %v1269
      %v1271 = vpop.xlane.xlu0 %1270
      %v1272 = vrcp.pop %v1268
      %v1273 = vrcp.pop %v1271
      %v1274 = vmul.f32 %v1263, %v1272
      %v1275 = vmul.f32 %v1265, %v1273
      %v1277 = vsel %vm719, %v582, 0
      %1279 = vmatprep.subr.mxu0 0.0
      %1280 = vmatpush1.msra.mxu0 %v1274
      %1281 = vmatprep.subr.mxu0 0.0
      %1282 = vmatpush1.msra.mxu0 %v1275
      %1283 = vmatprep.subr.mxu0 0.0
      %1284 = vmatpush1.msra.mxu0 0.0
      %1285 = vmatprep.subr.mxu0 0.0
      %1286 = vmatpush1.msra.mxu0 0.0
      %1287 = vmatprep.subr.mxu0 0.0
      %1288 = vmatpush1.msra.mxu0 0.0
      %1289 = vmatprep.subr.mxu0 0.0
      %1290 = vmatpush1.msra.mxu0 0.0
      %1291 = vmatprep.subr.mxu0 0.0
      %1292 = vmatpush1.msra.mxu0 0.0
      %1293 = vmatprep.subr.mxu0 0.0
      %1294 = vmatpush1.msra.mxu0 0.0
      %1295 = vmatprep.subr.mxu0 0.0
      %1296 = vmatpush1.msra.mxu0 0.0
      %1297 = vmatprep.subr.mxu0 0.0
      %1298 = vmatpush1.msra.mxu0 0.0
      %1299 = vmatprep.subr.mxu0 0.0
      %1300 = vmatpush1.msra.mxu0 0.0
      %1301 = vmatprep.subr.mxu0 0.0
      %1302 = vmatpush1.msra.mxu0 0.0
      %1303 = vmatprep.subr.mxu0 0.0
      %1304 = vmatpush1.msra.mxu0 0.0
      %1305 = vmatprep.subr.mxu0 0.0
      %1306 = vmatpush1.msra.mxu0 0.0
      %1307 = vmatprep.subr.mxu0 0.0
      %1308 = vmatpush1.msra.mxu0 0.0
      %1309 = vmatprep.subr.mxu0 0.0
      %1310 = vmatpush1.msra.mxu0 0.0
      %1311 = vmatprep.subr.mxu0 0.0
      %1312 = vmatpush1.msra.mxu0 0.0
      %1313 = vmatprep.subr.mxu0 0.0
      %1314 = vmatpush1.msra.mxu0 0.0
      %1315 = vmatprep.subr.mxu0 0.0
      %1316 = vmatpush1.msra.mxu0 0.0
      %1317 = vmatprep.subr.mxu0 0.0
      %1318 = vmatpush1.msra.mxu0 0.0
      %1319 = vmatprep.subr.mxu0 0.0
      %1320 = vmatpush1.msra.mxu0 0.0
      %1321 = vmatprep.subr.mxu0 0.0
      %1322 = vmatpush1.msra.mxu0 0.0
      %1323 = vmatprep.subr.mxu0 0.0
      %1324 = vmatpush1.msra.mxu0 0.0
      %1325 = vmatprep.subr.mxu0 0.0
      %1326 = vmatpush1.msra.mxu0 0.0
      %1327 = vmatprep.subr.mxu0 0.0
      %1328 = vmatpush1.msra.mxu0 0.0
      %1329 = vmatprep.subr.mxu0 0.0
      %1330 = vmatpush1.msra.mxu0 0.0
      %1331 = vmatprep.subr.mxu0 0.0
      %1332 = vmatpush1.msra.mxu0 0.0
      %1333 = vmatprep.subr.mxu0 0.0
      %1334 = vmatpush1.msra.mxu0 0.0
      %1335 = vmatprep.subr.mxu0 0.0
      %1336 = vmatpush1.msra.mxu0 0.0
      %1337 = vmatprep.subr.mxu0 0.0
      %1338 = vmatpush1.msra.mxu0 0.0
      %1339 = vmatprep.subr.mxu0 0.0
      %1340 = vmatpush1.msra.mxu0 0.0
      %1341 = vmatprep.subr.mxu0 0.0
      %1342 = vmatpush1.msra.mxu0 0.0
      %1343 = vmatprep.mubr.f32.mxu0 0.0
      %1344 = vmatmul.mubr.f32.gmra.mrb[0].mxu0 %v1277
      %v1345 = vpop.f32.mrb[0].mxu0
      %v1346 = vadd.f32 0.0, %v1345
      %v1347 = vpop.f32.mrb[0].mxu0
      %1348 = vdwg.mxu0
      %1349 = vrot.lane.b32.xlu0 %v621, 96
      %v1350 = vpop.permute.xlu0 %1349
      %1351 = vrot.lane.b32.xlu0 %v622, 96
      %v1352 = vpop.permute.xlu0 %1351
      %v1353 = vsel %vm637, %v1350, 0
      %v1355 = vsel %vm637, %v1352, 0
      %1357 = vmatprep.subr.mxu0 0.0
      %1358 = vmatpush1.msra.mxu0 %v547
      %1359 = vmatprep.subr.mxu0 0.0
      %1360 = vmatpush1.msra.mxu0 0.0
      %1361 = vmatprep.subr.mxu0 0.0
      %1362 = vmatpush1.msra.mxu0 0.0
      %1363 = vmatprep.subr.mxu0 0.0
      %1364 = vmatpush1.msra.mxu0 0.0
      %1365 = vmatprep.subr.mxu0 0.0
      %1366 = vmatpush1.msra.mxu0 0.0
      %1367 = vmatprep.subr.mxu0 0.0
      %1368 = vmatpush1.msra.mxu0 0.0
      %1369 = vmatprep.subr.mxu0 0.0
      %1370 = vmatpush1.msra.mxu0 0.0
      %1371 = vmatprep.subr.mxu0 0.0
      %1372 = vmatpush1.msra.mxu0 0.0
      %1373 = vmatprep.subr.mxu0 0.0
      %1374 = vmatpush1.msra.mxu0 0.0
      %1375 = vmatprep.subr.mxu0 0.0
      %1376 = vmatpush1.msra.mxu0 0.0
      %1377 = vmatprep.subr.mxu0 0.0
      %1378 = vmatpush1.msra.mxu0 0.0
      %1379 = vmatprep.subr.mxu0 0.0
      %1380 = vmatpush1.msra.mxu0 0.0
      %1381 = vmatprep.subr.mxu0 0.0
      %1382 = vmatpush1.msra.mxu0 0.0
      %1383 = vmatprep.subr.mxu0 0.0
      %1384 = vmatpush1.msra.mxu0 0.0
      %1385 = vmatprep.subr.mxu0 0.0
      %1386 = vmatpush1.msra.mxu0 0.0
      %1387 = vmatprep.subr.mxu0 0.0
      %1388 = vmatpush1.msra.mxu0 0.0
      %1389 = vmatprep.subr.mxu0 0.0
      %1390 = vmatpush1.msra.mxu0 0.0
      %1391 = vmatprep.subr.mxu0 0.0
      %1392 = vmatpush1.msra.mxu0 0.0
      %1393 = vmatprep.subr.mxu0 0.0
      %1394 = vmatpush1.msra.mxu0 0.0
      %1395 = vmatprep.subr.mxu0 0.0
      %1396 = vmatpush1.msra.mxu0 0.0
      %1397 = vmatprep.subr.mxu0 0.0
      %1398 = vmatpush1.msra.mxu0 0.0
      %1399 = vmatprep.subr.mxu0 0.0
      %1400 = vmatpush1.msra.mxu0 0.0
      %1401 = vmatprep.subr.mxu0 0.0
      %1402 = vmatpush1.msra.mxu0 0.0
      %1403 = vmatprep.subr.mxu0 0.0
      %1404 = vmatpush1.msra.mxu0 0.0
      %1405 = vmatprep.subr.mxu0 0.0
      %1406 = vmatpush1.msra.mxu0 0.0
      %1407 = vmatprep.subr.mxu0 0.0
      %1408 = vmatpush1.msra.mxu0 0.0
      %1409 = vmatprep.subr.mxu0 0.0
      %1410 = vmatpush1.msra.mxu0 0.0
      %1411 = vmatprep.subr.mxu0 0.0
      %1412 = vmatpush1.msra.mxu0 0.0
      %1413 = vmatprep.subr.mxu0 0.0
      %1414 = vmatpush1.msra.mxu0 0.0
      %1415 = vmatprep.subr.mxu0 0.0
      %1416 = vmatpush1.msra.mxu0 0.0
      %1417 = vmatprep.subr.mxu0 0.0
      %1418 = vmatpush1.msra.mxu0 0.0
      %1419 = vmatprep.subr.mxu0 0.0
      %1420 = vmatpush1.msra.mxu0 0.0
      %1421 = vmatprep.mubr.f32.mxu0 0.0
      %1422 = vmatmul.mubr.f32.gmra.mrb[0].mxu0 %v1353
      %v1423 = vpop.f32.mrb[0].mxu0
      %v1424 = vadd.f32 0.0, %v1423
      %v1425 = vpop.f32.mrb[0].mxu0
      %1426 = vmatprep.mubr.f32.mxu0 0.0
      %1427 = vmatmul.mubr.f32.gmra.mrb[0].mxu0 %v1355
      %v1428 = vpop.f32.mrb[0].mxu0
      %v1429 = vadd.f32 0.0, %v1428
      %v1430 = vpop.f32.mrb[0].mxu0
      %1431 = vdwg.mxu0
      %v1432 = vsel %vm719, %v1424, -inf
      %1433 = vmax.xlane.f32.xlu0 %v1432
      %v1434 = vpop.xlane.xlu0 %1433
      %v1435 = vsel %vm719, %v1429, -inf
      %1436 = vmax.xlane.f32.xlu0 %v1435
      %v1437 = vpop.xlane.xlu0 %1436
      %v1438 = vsub.f32 %v1424, %v1434
      %v1439 = vsub.f32 %v1429, %v1437
      %v1440 = vmul.f32 %v1438, 1.442695
      %v1441 = vpow.pop %v1440
      %v1442 = vmul.f32 %v1439, 1.442695
      %v1443 = vpow.pop %v1442
      %v1444 = vsel %vm719, %v1441, 0.0
      %1445 = vadd.xlane.f32.xlu0 %v1444
      %v1446 = vpop.xlane.xlu0 %1445
      %v1447 = vsel %vm719, %v1443, 0.0
      %1448 = vadd.xlane.f32.xlu0 %v1447
      %v1449 = vpop.xlane.xlu0 %1448
      %v1450 = vrcp.pop %v1446
      %v1451 = vrcp.pop %v1449
      %v1452 = vmul.f32 %v1441, %v1450
      %v1453 = vmul.f32 %v1443, %v1451
      %v1455 = vsel %vm719, %v587, 0
      %1457 = vmatprep.subr.mxu0 0.0
      %1458 = vmatpush1.msra.mxu0 %v1452
      %1459 = vmatprep.subr.mxu0 0.0
      %1460 = vmatpush1.msra.mxu0 %v1453
      %1461 = vmatprep.subr.mxu0 0.0
      %1462 = vmatpush1.msra.mxu0 0.0
      %1463 = vmatprep.subr.mxu0 0.0
      %1464 = vmatpush1.msra.mxu0 0.0
      %1465 = vmatprep.subr.mxu0 0.0
      %1466 = vmatpush1.msra.mxu0 0.0
      %1467 = vmatprep.subr.mxu0 0.0
      %1468 = vmatpush1.msra.mxu0 0.0
      %1469 = vmatprep.subr.mxu0 0.0
      %1470 = vmatpush1.msra.mxu0 0.0
      %1471 = vmatprep.subr.mxu0 0.0
      %1472 = vmatpush1.msra.mxu0 0.0
      %1473 = vmatprep.subr.mxu0 0.0
      %1474 = vmatpush1.msra.mxu0 0.0
      %1475 = vmatprep.subr.mxu0 0.0
      %1476 = vmatpush1.msra.mxu0 0.0
      %1477 = vmatprep.subr.mxu0 0.0
      %1478 = vmatpush1.msra.mxu0 0.0
      %1479 = vmatprep.subr.mxu0 0.0
      %1480 = vmatpush1.msra.mxu0 0.0
      %1481 = vmatprep.subr.mxu0 0.0
      %1482 = vmatpush1.msra.mxu0 0.0
      %1483 = vmatprep.subr.mxu0 0.0
      %1484 = vmatpush1.msra.mxu0 0.0
      %1485 = vmatprep.subr.mxu0 0.0
      %1486 = vmatpush1.msra.mxu0 0.0
      %1487 = vmatprep.subr.mxu0 0.0
      %1488 = vmatpush1.msra.mxu0 0.0
      %1489 = vmatprep.subr.mxu0 0.0
      %1490 = vmatpush1.msra.mxu0 0.0
      %1491 = vmatprep.subr.mxu0 0.0
      %1492 = vmatpush1.msra.mxu0 0.0
      %1493 = vmatprep.subr.mxu0 0.0
      %1494 = vmatpush1.msra.mxu0 0.0
      %1495 = vmatprep.subr.mxu0 0.0
      %1496 = vmatpush1.msra.mxu0 0.0
      %1497 = vmatprep.subr.mxu0 0.0
      %1498 = vmatpush1.msra.mxu0 0.0
      %1499 = vmatprep.subr.mxu0 0.0
      %1500 = vmatpush1.msra.mxu0 0.0
      %1501 = vmatprep.subr.mxu0 0.0
      %1502 = vmatpush1.msra.mxu0 0.0
      %1503 = vmatprep.subr.mxu0 0.0
      %1504 = vmatpush1.msra.mxu0 0.0
      %1505 = vmatprep.subr.mxu0 0.0
      %1506 = vmatpush1.msra.mxu0 0.0
      %1507 = vmatprep.subr.mxu0 0.0
      %1508 = vmatpush1.msra.mxu0 0.0
      %1509 = vmatprep.subr.mxu0 0.0
      %1510 = vmatpush1.msra.mxu0 0.0
      %1511 = vmatprep.subr.mxu0 0.0
      %1512 = vmatpush1.msra.mxu0 0.0
      %1513 = vmatprep.subr.mxu0 0.0
      %1514 = vmatpush1.msra.mxu0 0.0
      %1515 = vmatprep.subr.mxu0 0.0
      %1516 = vmatpush1.msra.mxu0 0.0
      %1517 = vmatprep.subr.mxu0 0.0
      %1518 = vmatpush1.msra.mxu0 0.0
      %1519 = vmatprep.subr.mxu0 0.0
      %1520 = vmatpush1.msra.mxu0 0.0
      %1521 = vmatprep.mubr.f32.mxu0 0.0
      %1522 = vmatmul.mubr.f32.gmra.mrb[0].mxu0 %v1455
      %v1523 = vpop.f32.mrb[0].mxu0
      %v1524 = vadd.f32 0.0, %v1523
      %v1525 = vpop.f32.mrb[0].mxu0
      %1526 = vdwg.mxu0
      %1527 = vrot.lane.b32.xlu0 %v621, 88
      %v1528 = vpop.permute.xlu0 %1527
      %1529 = vrot.lane.b32.xlu0 %v622, 88
      %v1530 = vpop.permute.xlu0 %1529
      %v1531 = vsel %vm637, %v1528, 0
      %v1533 = vsel %vm637, %v1530, 0
      %1535 = vmatprep.subr.mxu0 0.0
      %1536 = vmatpush1.msra.mxu0 %v552
      %1537 = vmatprep.subr.mxu0 0.0
      %1538 = vmatpush1.msra.mxu0 0.0
      %1539 = vmatprep.subr.mxu0 0.0
      %1540 = vmatpush1.msra.mxu0 0.0
      %1541 = vmatprep.subr.mxu0 0.0
      %1542 = vmatpush1.msra.mxu0 0.0
      %1543 = vmatprep.subr.mxu0 0.0
      %1544 = vmatpush1.msra.mxu0 0.0
      %1545 = vmatprep.subr.mxu0 0.0
      %1546 = vmatpush1.msra.mxu0 0.0
      %1547 = vmatprep.subr.mxu0 0.0
      %1548 = vmatpush1.msra.mxu0 0.0
      %1549 = vmatprep.subr.mxu0 0.0
      %1550 = vmatpush1.msra.mxu0 0.0
      %1551 = vmatprep.subr.mxu0 0.0
      %1552 = vmatpush1.msra.mxu0 0.0
      %1553 = vmatprep.subr.mxu0 0.0
      %1554 = vmatpush1.msra.mxu0 0.0
      %1555 = vmatprep.subr.mxu0 0.0
      %1556 = vmatpush1.msra.mxu0 0.0
      %1557 = vmatprep.subr.mxu0 0.0
      %1558 = vmatpush1.msra.mxu0 0.0
      %1559 = vmatprep.subr.mxu0 0.0
      %1560 = vmatpush1.msra.mxu0 0.0
      %1561 = vmatprep.subr.mxu0 0.0
      %1562 = vmatpush1.msra.mxu0 0.0
      %1563 = vmatprep.subr.mxu0 0.0
      %1564 = vmatpush1.msra.mxu0 0.0
      %1565 = vmatprep.subr.mxu0 0.0
      %1566 = vmatpush1.msra.mxu0 0.0
      %1567 = vmatprep.subr.mxu0 0.0
      %1568 = vmatpush1.msra.mxu0 0.0
      %1569 = vmatprep.subr.mxu0 0.0
      %1570 = vmatpush1.msra.mxu0 0.0
      %1571 = vmatprep.subr.mxu0 0.0
      %1572 = vmatpush1.msra.mxu0 0.0
      %1573 = vmatprep.subr.mxu0 0.0
      %1574 = vmatpush1.msra.mxu0 0.0
      %1575 = vmatprep.subr.mxu0 0.0
      %1576 = vmatpush1.msra.mxu0 0.0
      %1577 = vmatprep.subr.mxu0 0.0
      %1578 = vmatpush1.msra.mxu0 0.0
      %1579 = vmatprep.subr.mxu0 0.0
      %1580 = vmatpush1.msra.mxu0 0.0
      %1581 = vmatprep.subr.mxu0 0.0
      %1582 = vmatpush1.msra.mxu0 0.0
      %1583 = vmatprep.subr.mxu0 0.0
      %1584 = vmatpush1.msra.mxu0 0.0
      %1585 = vmatprep.subr.mxu0 0.0
      %1586 = vmatpush1.msra.mxu0 0.0
      %1587 = vmatprep.subr.mxu0 0.0
      %1588 = vmatpush1.msra.mxu0 0.0
      %1589 = vmatprep.subr.mxu0 0.0
      %1590 = vmatpush1.msra.mxu0 0.0
      %1591 = vmatprep.subr.mxu0 0.0
      %1592 = vmatpush1.msra.mxu0 0.0
      %1593 = vmatprep.subr.mxu0 0.0
      %1594 = vmatpush1.msra.mxu0 0.0
      %1595 = vmatprep.subr.mxu0 0.0
      %1596 = vmatpush1.msra.mxu0 0.0
      %1597 = vmatprep.subr.mxu0 0.0
      %1598 = vmatpush1.msra.mxu0 0.0
      %1599 = vmatprep.mubr.f32.mxu0 0.0
      %1600 = vmatmul.mubr.f32.gmra.mrb[0].mxu0 %v1531
      %v1601 = vpop.f32.mrb[0].mxu0
      %v1602 = vadd.f32 0.0, %v1601
      %v1603 = vpop.f32.mrb[0].mxu0
      %1604 = vmatprep.mubr.f32.mxu0 0.0
      %1605 = vmatmul.mubr.f32.gmra.mrb[0].mxu0 %v1533
      %v1606 = vpop.f32.mrb[0].mxu0
      %v1607 = vadd.f32 0.0, %v1606
      %v1608 = vpop.f32.mrb[0].mxu0
      %1609 = vdwg.mxu0
      %v1610 = vsel %vm719, %v1602, -inf
      %1611 = vmax.xlane.f32.xlu0 %v1610
      %v1612 = vpop.xlane.xlu0 %1611
      %v1613 = vsel %vm719, %v1607, -inf
      %1614 = vmax.xlane.f32.xlu0 %v1613
      %v1615 = vpop.xlane.xlu0 %1614
      %v1616 = vsub.f32 %v1602, %v1612
      %v1617 = vsub.f32 %v1607, %v1615
      %v1618 = vmul.f32 %v1616, 1.442695
      %v1619 = vpow.pop %v1618
      %v1620 = vmul.f32 %v1617, 1.442695
      %v1621 = vpow.pop %v1620
      %v1622 = vsel %vm719, %v1619, 0.0
      %1623 = vadd.xlane.f32.xlu0 %v1622
      %v1624 = vpop.xlane.xlu0 %1623
      %v1625 = vsel %vm719, %v1621, 0.0
      %1626 = vadd.xlane.f32.xlu0 %v1625
      %v1627 = vpop.xlane.xlu0 %1626
      %v1628 = vrcp.pop %v1624
      %v1629 = vrcp.pop %v1627
      %v1630 = vmul.f32 %v1619, %v1628
      %v1631 = vmul.f32 %v1621, %v1629
      %v1633 = vsel %vm719, %v592, 0
      %1635 = vmatprep.subr.mxu0 0.0
      %1636 = vmatpush1.msra.mxu0 %v1630
      %1637 = vmatprep.subr.mxu0 0.0
      %1638 = vmatpush1.msra.mxu0 %v1631
      %1639 = vmatprep.subr.mxu0 0.0
      %1640 = vmatpush1.msra.mxu0 0.0
      %1641 = vmatprep.subr.mxu0 0.0
      %1642 = vmatpush1.msra.mxu0 0.0
      %1643 = vmatprep.subr.mxu0 0.0
      %1644 = vmatpush1.msra.mxu0 0.0
      %1645 = vmatprep.subr.mxu0 0.0
      %1646 = vmatpush1.msra.mxu0 0.0
      %1647 = vmatprep.subr.mxu0 0.0
      %1648 = vmatpush1.msra.mxu0 0.0
      %1649 = vmatprep.subr.mxu0 0.0
      %1650 = vmatpush1.msra.mxu0 0.0
      %1651 = vmatprep.subr.mxu0 0.0
      %1652 = vmatpush1.msra.mxu0 0.0
      %1653 = vmatprep.subr.mxu0 0.0
      %1654 = vmatpush1.msra.mxu0 0.0
      %1655 = vmatprep.subr.mxu0 0.0
      %1656 = vmatpush1.msra.mxu0 0.0
      %1657 = vmatprep.subr.mxu0 0.0
      %1658 = vmatpush1.msra.mxu0 0.0
      %1659 = vmatprep.subr.mxu0 0.0
      %1660 = vmatpush1.msra.mxu0 0.0
      %1661 = vmatprep.subr.mxu0 0.0
      %1662 = vmatpush1.msra.mxu0 0.0
      %1663 = vmatprep.subr.mxu0 0.0
      %1664 = vmatpush1.msra.mxu0 0.0
      %1665 = vmatprep.subr.mxu0 0.0
      %1666 = vmatpush1.msra.mxu0 0.0
      %1667 = vmatprep.subr.mxu0 0.0
      %1668 = vmatpush1.msra.mxu0 0.0
      %1669 = vmatprep.subr.mxu0 0.0
      %1670 = vmatpush1.msra.mxu0 0.0
      %1671 = vmatprep.subr.mxu0 0.0
      %1672 = vmatpush1.msra.mxu0 0.0
      %1673 = vmatprep.subr.mxu0 0.0
      %1674 = vmatpush1.msra.mxu0 0.0
      %1675 = vmatprep.subr.mxu0 0.0
      %1676 = vmatpush1.msra.mxu0 0.0
      %1677 = vmatprep.subr.mxu0 0.0
      %1678 = vmatpush1.msra.mxu0 0.0
      %1679 = vmatprep.subr.mxu0 0.0
      %1680 = vmatpush1.msra.mxu0 0.0
      %1681 = vmatprep.subr.mxu0 0.0
      %1682 = vmatpush1.msra.mxu0 0.0
      %1683 = vmatprep.subr.mxu0 0.0
      %1684 = vmatpush1.msra.mxu0 0.0
      %1685 = vmatprep.subr.mxu0 0.0
      %1686 = vmatpush1.msra.mxu0 0.0
      %1687 = vmatprep.subr.mxu0 0.0
      %1688 = vmatpush1.msra.mxu0 0.0
      %1689 = vmatprep.subr.mxu0 0.0
      %1690 = vmatpush1.msra.mxu0 0.0
      %1691 = vmatprep.subr.mxu0 0.0
      %1692 = vmatpush1.msra.mxu0 0.0
      %1693 = vmatprep.subr.mxu0 0.0
      %1694 = vmatpush1.msra.mxu0 0.0
      %1695 = vmatprep.subr.mxu0 0.0
      %1696 = vmatpush1.msra.mxu0 0.0
      %1697 = vmatprep.subr.mxu0 0.0
      %1698 = vmatpush1.msra.mxu0 0.0
      %1699 = vmatprep.mubr.f32.mxu0 0.0
      %1700 = vmatmul.mubr.f32.gmra.mrb[0].mxu0 %v1633
      %v1701 = vpop.f32.mrb[0].mxu0
      %v1702 = vadd.f32 0.0, %v1701
      %v1703 = vpop.f32.mrb[0].mxu0
      %1704 = vdwg.mxu0
      %1705 = vrot.lane.b32.xlu0 %v621, 80
      %v1706 = vpop.permute.xlu0 %1705
      %1707 = vrot.lane.b32.xlu0 %v622, 80
      %v1708 = vpop.permute.xlu0 %1707
      %v1709 = vsel %vm637, %v1706, 0
      %v1711 = vsel %vm637, %v1708, 0
      %1713 = vmatprep.subr.mxu0 0.0
      %1714 = vmatpush1.msra.mxu0 %v557
      %1715 = vmatprep.subr.mxu0 0.0
      %1716 = vmatpush1.msra.mxu0 0.0
      %1717 = vmatprep.subr.mxu0 0.0
      %1718 = vmatpush1.msra.mxu0 0.0
      %1719 = vmatprep.subr.mxu0 0.0
      %1720 = vmatpush1.msra.mxu0 0.0
      %1721 = vmatprep.subr.mxu0 0.0
      %1722 = vmatpush1.msra.mxu0 0.0
      %1723 = vmatprep.subr.mxu0 0.0
      %1724 = vmatpush1.msra.mxu0 0.0
      %1725 = vmatprep.subr.mxu0 0.0
      %1726 = vmatpush1.msra.mxu0 0.0
      %1727 = vmatprep.subr.mxu0 0.0
      %1728 = vmatpush1.msra.mxu0 0.0
      %1729 = vmatprep.subr.mxu0 0.0
      %1730 = vmatpush1.msra.mxu0 0.0
      %1731 = vmatprep.subr.mxu0 0.0
      %1732 = vmatpush1.msra.mxu0 0.0
      %1733 = vmatprep.subr.mxu0 0.0
      %1734 = vmatpush1.msra.mxu0 0.0
      %1735 = vmatprep.subr.mxu0 0.0
      %1736 = vmatpush1.msra.mxu0 0.0
      %1737 = vmatprep.subr.mxu0 0.0
      %1738 = vmatpush1.msra.mxu0 0.0
      %1739 = vmatprep.subr.mxu0 0.0
      %1740 = vmatpush1.msra.mxu0 0.0
      %1741 = vmatprep.subr.mxu0 0.0
      %1742 = vmatpush1.msra.mxu0 0.0
      %1743 = vmatprep.subr.mxu0 0.0
      %1744 = vmatpush1.msra.mxu0 0.0
      %1745 = vmatprep.subr.mxu0 0.0
      %1746 = vmatpush1.msra.mxu0 0.0
      %1747 = vmatprep.subr.mxu0 0.0
      %1748 = vmatpush1.msra.mxu0 0.0
      %1749 = vmatprep.subr.mxu0 0.0
      %1750 = vmatpush1.msra.mxu0 0.0
      %1751 = vmatprep.subr.mxu0 0.0
      %1752 = vmatpush1.msra.mxu0 0.0
      %1753 = vmatprep.subr.mxu0 0.0
      %1754 = vmatpush1.msra.mxu0 0.0
      %1755 = vmatprep.subr.mxu0 0.0
      %1756 = vmatpush1.msra.mxu0 0.0
      %1757 = vmatprep.subr.mxu0 0.0
      %1758 = vmatpush1.msra.mxu0 0.0
      %1759 = vmatprep.subr.mxu0 0.0
      %1760 = vmatpush1.msra.mxu0 0.0
      %1761 = vmatprep.subr.mxu0 0.0
      %1762 = vmatpush1.msra.mxu0 0.0
      %1763 = vmatprep.subr.mxu0 0.0
      %1764 = vmatpush1.msra.mxu0 0.0
      %1765 = vmatprep.subr.mxu0 0.0
      %1766 = vmatpush1.msra.mxu0 0.0
      %1767 = vmatprep.subr.mxu0 0.0
      %1768 = vmatpush1.msra.mxu0 0.0
      %1769 = vmatprep.subr.mxu0 0.0
      %1770 = vmatpush1.msra.mxu0 0.0
      %1771 = vmatprep.subr.mxu0 0.0
      %1772 = vmatpush1.msra.mxu0 0.0
      %1773 = vmatprep.subr.mxu0 0.0
      %1774 = vmatpush1.msra.mxu0 0.0
      %1775 = vmatprep.subr.mxu0 0.0
      %1776 = vmatpush1.msra.mxu0 0.0
      %1777 = vmatprep.mubr.f32.mxu0 0.0
      %1778 = vmatmul.mubr.f32.gmra.mrb[0].mxu0 %v1709
      %v1779 = vpop.f32.mrb[0].mxu0
      %v1780 = vadd.f32 0.0, %v1779
      %v1781 = vpop.f32.mrb[0].mxu0
      %1782 = vmatprep.mubr.f32.mxu0 0.0
      %1783 = vmatmul.mubr.f32.gmra.mrb[0].mxu0 %v1711
      %v1784 = vpop.f32.mrb[0].mxu0
      %v1785 = vadd.f32 0.0, %v1784
      %v1786 = vpop.f32.mrb[0].mxu0
      %1787 = vdwg.mxu0
      %v1788 = vsel %vm719, %v1780, -inf
      %1789 = vmax.xlane.f32.xlu0 %v1788
      %v1790 = vpop.xlane.xlu0 %1789
      %v1791 = vsel %vm719, %v1785, -inf
      %1792 = vmax.xlane.f32.xlu0 %v1791
      %v1793 = vpop.xlane.xlu0 %1792
      %v1794 = vsub.f32 %v1780, %v1790
      %v1795 = vsub.f32 %v1785, %v1793
      %v1796 = vmul.f32 %v1794, 1.442695
      %v1797 = vpow.pop %v1796
      %v1798 = vmul.f32 %v1795, 1.442695
      %v1799 = vpow.pop %v1798
      %v1800 = vsel %vm719, %v1797, 0.0
      %1801 = vadd.xlane.f32.xlu0 %v1800
      %v1802 = vpop.xlane.xlu0 %1801
      %v1803 = vsel %vm719, %v1799, 0.0
      %1804 = vadd.xlane.f32.xlu0 %v1803
      %v1805 = vpop.xlane.xlu0 %1804
      %v1806 = vrcp.pop %v1802
      %v1807 = vrcp.pop %v1805
      %v1808 = vmul.f32 %v1797, %v1806
      %v1809 = vmul.f32 %v1799, %v1807
      %v1811 = vsel %vm719, %v597, 0
      %1813 = vmatprep.subr.mxu0 0.0
      %1814 = vmatpush1.msra.mxu0 %v1808
      %1815 = vmatprep.subr.mxu0 0.0
      %1816 = vmatpush1.msra.mxu0 %v1809
      %1817 = vmatprep.subr.mxu0 0.0
      %1818 = vmatpush1.msra.mxu0 0.0
      %1819 = vmatprep.subr.mxu0 0.0
      %1820 = vmatpush1.msra.mxu0 0.0
      %1821 = vmatprep.subr.mxu0 0.0
      %1822 = vmatpush1.msra.mxu0 0.0
      %1823 = vmatprep.subr.mxu0 0.0
      %1824 = vmatpush1.msra.mxu0 0.0
      %1825 = vmatprep.subr.mxu0 0.0
      %1826 = vmatpush1.msra.mxu0 0.0
      %1827 = vmatprep.subr.mxu0 0.0
      %1828 = vmatpush1.msra.mxu0 0.0
      %1829 = vmatprep.subr.mxu0 0.0
      %1830 = vmatpush1.msra.mxu0 0.0
      %1831 = vmatprep.subr.mxu0 0.0
      %1832 = vmatpush1.msra.mxu0 0.0
      %1833 = vmatprep.subr.mxu0 0.0
      %1834 = vmatpush1.msra.mxu0 0.0
      %1835 = vmatprep.subr.mxu0 0.0
      %1836 = vmatpush1.msra.mxu0 0.0
      %1837 = vmatprep.subr.mxu0 0.0
      %1838 = vmatpush1.msra.mxu0 0.0
      %1839 = vmatprep.subr.mxu0 0.0
      %1840 = vmatpush1.msra.mxu0 0.0
      %1841 = vmatprep.subr.mxu0 0.0
      %1842 = vmatpush1.msra.mxu0 0.0
      %1843 = vmatprep.subr.mxu0 0.0
      %1844 = vmatpush1.msra.mxu0 0.0
      %1845 = vmatprep.subr.mxu0 0.0
      %1846 = vmatpush1.msra.mxu0 0.0
      %1847 = vmatprep.subr.mxu0 0.0
      %1848 = vmatpush1.msra.mxu0 0.0
      %1849 = vmatprep.subr.mxu0 0.0
      %1850 = vmatpush1.msra.mxu0 0.0
      %1851 = vmatprep.subr.mxu0 0.0
      %1852 = vmatpush1.msra.mxu0 0.0
      %1853 = vmatprep.subr.mxu0 0.0
      %1854 = vmatpush1.msra.mxu0 0.0
      %1855 = vmatprep.subr.mxu0 0.0
      %1856 = vmatpush1.msra.mxu0 0.0
      %1857 = vmatprep.subr.mxu0 0.0
      %1858 = vmatpush1.msra.mxu0 0.0
      %1859 = vmatprep.subr.mxu0 0.0
      %1860 = vmatpush1.msra.mxu0 0.0
      %1861 = vmatprep.subr.mxu0 0.0
      %1862 = vmatpush1.msra.mxu0 0.0
      %1863 = vmatprep.subr.mxu0 0.0
      %1864 = vmatpush1.msra.mxu0 0.0
      %1865 = vmatprep.subr.mxu0 0.0
      %1866 = vmatpush1.msra.mxu0 0.0
      %1867 = vmatprep.subr.mxu0 0.0
      %1868 = vmatpush1.msra.mxu0 0.0
      %1869 = vmatprep.subr.mxu0 0.0
      %1870 = vmatpush1.msra.mxu0 0.0
      %1871 = vmatprep.subr.mxu0 0.0
      %1872 = vmatpush1.msra.mxu0 0.0
      %1873 = vmatprep.subr.mxu0 0.0
      %1874 = vmatpush1.msra.mxu0 0.0
      %1875 = vmatprep.subr.mxu0 0.0
      %1876 = vmatpush1.msra.mxu0 0.0
      %1877 = vmatprep.mubr.f32.mxu0 0.0
      %1878 = vmatmul.mubr.f32.gmra.mrb[0].mxu0 %v1811
      %v1879 = vpop.f32.mrb[0].mxu0
      %v1880 = vadd.f32 0.0, %v1879
      %v1881 = vpop.f32.mrb[0].mxu0
      %1882 = vdwg.mxu0
      %1883 = vrot.lane.b32.xlu0 %v621, 72
      %v1884 = vpop.permute.xlu0 %1883
      %1885 = vrot.lane.b32.xlu0 %v622, 72
      %v1886 = vpop.permute.xlu0 %1885
      %v1887 = vsel %vm637, %v1884, 0
      %v1889 = vsel %vm637, %v1886, 0
      %1891 = vmatprep.subr.mxu0 0.0
      %1892 = vmatpush1.msra.mxu0 %v562
      %1893 = vmatprep.subr.mxu0 0.0
      %1894 = vmatpush1.msra.mxu0 0.0
      %1895 = vmatprep.subr.mxu0 0.0
      %1896 = vmatpush1.msra.mxu0 0.0
      %1897 = vmatprep.subr.mxu0 0.0
      %1898 = vmatpush1.msra.mxu0 0.0
      %1899 = vmatprep.subr.mxu0 0.0
      %1900 = vmatpush1.msra.mxu0 0.0
      %1901 = vmatprep.subr.mxu0 0.0
      %1902 = vmatpush1.msra.mxu0 0.0
      %1903 = vmatprep.subr.mxu0 0.0
      %1904 = vmatpush1.msra.mxu0 0.0
      %1905 = vmatprep.subr.mxu0 0.0
      %1906 = vmatpush1.msra.mxu0 0.0
      %1907 = vmatprep.subr.mxu0 0.0
      %1908 = vmatpush1.msra.mxu0 0.0
      %1909 = vmatprep.subr.mxu0 0.0
      %1910 = vmatpush1.msra.mxu0 0.0
      %1911 = vmatprep.subr.mxu0 0.0
      %1912 = vmatpush1.msra.mxu0 0.0
      %1913 = vmatprep.subr.mxu0 0.0
      %1914 = vmatpush1.msra.mxu0 0.0
      %1915 = vmatprep.subr.mxu0 0.0
      %1916 = vmatpush1.msra.mxu0 0.0
      %1917 = vmatprep.subr.mxu0 0.0
      %1918 = vmatpush1.msra.mxu0 0.0
      %1919 = vmatprep.subr.mxu0 0.0
      %1920 = vmatpush1.msra.mxu0 0.0
      %1921 = vmatprep.subr.mxu0 0.0
      %1922 = vmatpush1.msra.mxu0 0.0
      %1923 = vmatprep.subr.mxu0 0.0
      %1924 = vmatpush1.msra.mxu0 0.0
      %1925 = vmatprep.subr.mxu0 0.0
      %1926 = vmatpush1.msra.mxu0 0.0
      %1927 = vmatprep.subr.mxu0 0.0
      %1928 = vmatpush1.msra.mxu0 0.0
      %1929 = vmatprep.subr.mxu0 0.0
      %1930 = vmatpush1.msra.mxu0 0.0
      %1931 = vmatprep.subr.mxu0 0.0
      %1932 = vmatpush1.msra.mxu0 0.0
      %1933 = vmatprep.subr.mxu0 0.0
      %1934 = vmatpush1.msra.mxu0 0.0
      %1935 = vmatprep.subr.mxu0 0.0
      %1936 = vmatpush1.msra.mxu0 0.0
      %1937 = vmatprep.subr.mxu0 0.0
      %1938 = vmatpush1.msra.mxu0 0.0
      %1939 = vmatprep.subr.mxu0 0.0
      %1940 = vmatpush1.msra.mxu0 0.0
      %1941 = vmatprep.subr.mxu0 0.0
      %1942 = vmatpush1.msra.mxu0 0.0
      %1943 = vmatprep.subr.mxu0 0.0
      %1944 = vmatpush1.msra.mxu0 0.0
      %1945 = vmatprep.subr.mxu0 0.0
      %1946 = vmatpush1.msra.mxu0 0.0
      %1947 = vmatprep.subr.mxu0 0.0
      %1948 = vmatpush1.msra.mxu0 0.0
      %1949 = vmatprep.subr.mxu0 0.0
      %1950 = vmatpush1.msra.mxu0 0.0
      %1951 = vmatprep.subr.mxu0 0.0
      %1952 = vmatpush1.msra.mxu0 0.0
      %1953 = vmatprep.subr.mxu0 0.0
      %1954 = vmatpush1.msra.mxu0 0.0
      %1955 = vmatprep.mubr.f32.mxu0 0.0
      %1956 = vmatmul.mubr.f32.gmra.mrb[0].mxu0 %v1887
      %v1957 = vpop.f32.mrb[0].mxu0
      %v1958 = vadd.f32 0.0, %v1957
      %v1959 = vpop.f32.mrb[0].mxu0
      %1960 = vmatprep.mubr.f32.mxu0 0.0
      %1961 = vmatmul.mubr.f32.gmra.mrb[0].mxu0 %v1889
      %v1962 = vpop.f32.mrb[0].mxu0
      %v1963 = vadd.f32 0.0, %v1962
      %v1964 = vpop.f32.mrb[0].mxu0
      %1965 = vdwg.mxu0
      %v1966 = vsel %vm719, %v1958, -inf
      %1967 = vmax.xlane.f32.xlu0 %v1966
      %v1968 = vpop.xlane.xlu0 %1967
      %v1969 = vsel %vm719, %v1963, -inf
      %1970 = vmax.xlane.f32.xlu0 %v1969
      %v1971 = vpop.xlane.xlu0 %1970
      %v1972 = vsub.f32 %v1958, %v1968
      %v1973 = vsub.f32 %v1963, %v1971
      %v1974 = vmul.f32 %v1972, 1.442695
      %v1975 = vpow.pop %v1974
      %v1976 = vmul.f32 %v1973, 1.442695
      %v1977 = vpow.pop %v1976
      %v1978 = vsel %vm719, %v1975, 0.0
      %1979 = vadd.xlane.f32.xlu0 %v1978
      %v1980 = vpop.xlane.xlu0 %1979
      %v1981 = vsel %vm719, %v1977, 0.0
      %1982 = vadd.xlane.f32.xlu0 %v1981
      %v1983 = vpop.xlane.xlu0 %1982
      %v1984 = vrcp.pop %v1980
      %v1985 = vrcp.pop %v1983
      %v1986 = vmul.f32 %v1975, %v1984
      %v1987 = vmul.f32 %v1977, %v1985
      %v1989 = vsel %vm719, %v602, 0
      %1991 = vmatprep.subr.mxu0 0.0
      %1992 = vmatpush1.msra.mxu0 %v1986
      %1993 = vmatprep.subr.mxu0 0.0
      %1994 = vmatpush1.msra.mxu0 %v1987
      %1995 = vmatprep.subr.mxu0 0.0
      %1996 = vmatpush1.msra.mxu0 0.0
      %1997 = vmatprep.subr.mxu0 0.0
      %1998 = vmatpush1.msra.mxu0 0.0
      %1999 = vmatprep.subr.mxu0 0.0
      %2000 = vmatpush1.msra.mxu0 0.0
      %2001 = vmatprep.subr.mxu0 0.0
      %2002 = vmatpush1.msra.mxu0 0.0
      %2003 = vmatprep.subr.mxu0 0.0
      %2004 = vmatpush1.msra.mxu0 0.0
      %2005 = vmatprep.subr.mxu0 0.0
      %2006 = vmatpush1.msra.mxu0 0.0
      %2007 = vmatprep.subr.mxu0 0.0
      %2008 = vmatpush1.msra.mxu0 0.0
      %2009 = vmatprep.subr.mxu0 0.0
      %2010 = vmatpush1.msra.mxu0 0.0
      %2011 = vmatprep.subr.mxu0 0.0
      %2012 = vmatpush1.msra.mxu0 0.0
      %2013 = vmatprep.subr.mxu0 0.0
      %2014 = vmatpush1.msra.mxu0 0.0
      %2015 = vmatprep.subr.mxu0 0.0
      %2016 = vmatpush1.msra.mxu0 0.0
      %2017 = vmatprep.subr.mxu0 0.0
      %2018 = vmatpush1.msra.mxu0 0.0
      %2019 = vmatprep.subr.mxu0 0.0
      %2020 = vmatpush1.msra.mxu0 0.0
      %2021 = vmatprep.subr.mxu0 0.0
      %2022 = vmatpush1.msra.mxu0 0.0
      %2023 = vmatprep.subr.mxu0 0.0
      %2024 = vmatpush1.msra.mxu0 0.0
      %2025 = vmatprep.subr.mxu0 0.0
      %2026 = vmatpush1.msra.mxu0 0.0
      %2027 = vmatprep.subr.mxu0 0.0
      %2028 = vmatpush1.msra.mxu0 0.0
      %2029 = vmatprep.subr.mxu0 0.0
      %2030 = vmatpush1.msra.mxu0 0.0
      %2031 = vmatprep.subr.mxu0 0.0
      %2032 = vmatpush1.msra.mxu0 0.0
      %2033 = vmatprep.subr.mxu0 0.0
      %2034 = vmatpush1.msra.mxu0 0.0
      %2035 = vmatprep.subr.mxu0 0.0
      %2036 = vmatpush1.msra.mxu0 0.0
      %2037 = vmatprep.subr.mxu0 0.0
      %2038 = vmatpush1.msra.mxu0 0.0
      %2039 = vmatprep.subr.mxu0 0.0
      %2040 = vmatpush1.msra.mxu0 0.0
      %2041 = vmatprep.subr.mxu0 0.0
      %2042 = vmatpush1.msra.mxu0 0.0
      %2043 = vmatprep.subr.mxu0 0.0
      %2044 = vmatpush1.msra.mxu0 0.0
      %2045 = vmatprep.subr.mxu0 0.0
      %2046 = vmatpush1.msra.mxu0 0.0
      %2047 = vmatprep.subr.mxu0 0.0
      %2048 = vmatpush1.msra.mxu0 0.0
      %2049 = vmatprep.subr.mxu0 0.0
      %2050 = vmatpush1.msra.mxu0 0.0
      %2051 = vmatprep.subr.mxu0 0.0
      %2052 = vmatpush1.msra.mxu0 0.0
      %2053 = vmatprep.subr.mxu0 0.0
      %2054 = vmatpush1.msra.mxu0 0.0
      %2055 = vmatprep.mubr.f32.mxu0 0.0
      %2056 = vmatmul.mubr.f32.gmra.mrb[0].mxu0 %v1989
      %v2057 = vpop.f32.mrb[0].mxu0
      %v2058 = vadd.f32 0.0, %v2057
      %v2059 = vpop.f32.mrb[0].mxu0
      %2060 = vdwg.mxu0
      %2061 = vst.msk [vmem:[%s170] sm:$0xff] %vm719, %v812
      %2062 = vst.msk [vmem:[%s170 + $0x8] sm:$0xff] %vm719, %v990
      %2063 = vst.msk [vmem:[%s170 + $0x10] sm:$0xff] %vm719, %v1168
      %2064 = vst.msk [vmem:[%s170 + $0x18] sm:$0xff] %vm719, %v1346
      %2065 = vst.msk [vmem:[%s170 + $0x20] sm:$0xff] %vm719, %v1524
      %2066 = vst.msk [vmem:[%s170 + $0x28] sm:$0xff] %vm719, %v1702
      %2067 = vst.msk [vmem:[%s170 + $0x30] sm:$0xff] %vm719, %v1880
      %2068 = vst.msk [vmem:[%s170 + $0x38] sm:$0xff] %vm719, %v2058
      %p2069 = scmp.lt.s32.totalorder %s14, 1
      %s2070 = scalar_select %p2069, %s14, 1
      %s2071 = smul.addr %s2070, 8
      %s2072 = smul.addr %s2071, 8
      %s2073 = scalar_lea.vmem %s3, %s2072
      // Predicated region
      $region33: #{attention_module_forward.1} parent=31 // pred_check
        %p2074 = pneg %p100
      $region34: #{attention_module_forward.1} parent=31 // pred_check_branch
        %2076 = sbr.rel (%p2074) target = $region36
      $region35: #{attention_module_forward.1} parent=31 // pred_region
        _
      $region36: #{attention_module_forward.1} parent=31 // pred_fallthru
        _
    $region32: #{attention_module_forward.1} parent=5 // pred_fallthru
      _
    %p2077 = scmp.le.s32.totalorder 2, %s9
    // Predicated region
    $region37: #{attention_module_forward.1} parent=5 // pred_check
      %p2078 = pneg %p2077
    $region38: #{attention_module_forward.1} parent=5 // pred_check_branch
      %2080 = sbr.rel (%p2078) target = $region40
    $region39: #{attention_module_forward.1} parent=5 // pred_region
      %s2081 = ssub.s32 %s9, 2
      // Predicated region
      $region41: #{attention_module_forward.1} parent=39 // pred_check
        %p2082 = pneg %p106
      $region42: #{attention_module_forward.1} parent=39 // pred_check_branch
        %2084 = sbr.rel (%p2082) target = $region44
      $region43: #{attention_module_forward.1} parent=39 // pred_region
        %p2085 = scmp.lt.s32.totalorder %s15, 1
        %s2086 = scalar_select %p2085, %s15, 1
        %s2087 = smul.addr %s2086, 8
        %s2088 = smul.addr %s2087, 8
        %s2089 = scalar_lea.vmem %s3, %s2088
      $region44: #{attention_module_forward.1} parent=39 // pred_fallthru
        _
    $region40: #{attention_module_forward.1} parent=5 // pred_fallthru
      _
  $region6: #{attention_module_forward.1} parent=0 // loop_footer
    %s13 = sadd.s32 1, %s9
  $region7: #{attention_module_forward.1} parent=0 // loop_footer_branch
    %8 = sbr.rel target = $region3
  $region8: #{attention_module_forward.1} parent=0 // loop_exit
    _

</llo_original>
